<compile_context>
chip_gen: v7x
topology: tpu7x:2x2x1
jax: 0.10.0
libtpu: 0.0.40
codegen_flags: <defaults>
</compile_context>

<pallas_src>
import math

import jax
import jax.numpy as jnp
from jax.experimental import pallas as pl
from jax.experimental.pallas import tpu as pltpu

MEAN = 0.1307
SIGMA = 0.3081


def _make_fc_kernel(num_layers):
    """Build a fused Normalization + Flatten + MLP kernel for `num_layers` Linear layers."""

    def kernel(x_ref, *refs):
        # refs = (w0_t, b0, w1_t, b1, ..., w_{L-1}_t, b_{L-1}, out_ref)
        o_ref = refs[-1]
        # Normalization (exactly (x - mean) / sigma, in f32).
        h = (x_ref[...].astype(jnp.float32) - jnp.float32(MEAN)) / jnp.float32(SIGMA)
        for li in range(num_layers):
            w_t = refs[2 * li][...].astype(jnp.float32)      # (in_i, out_i), pre-transposed
            b = refs[2 * li + 1][...].astype(jnp.float32)    # (1, out_i)
            h = jnp.dot(
                h, w_t,
                preferred_element_type=jnp.float32,
                precision=jax.lax.Precision.HIGHEST,
            ) + b
            if li + 1 < num_layers:
                h = jnp.maximum(h, 0.0)
        o_ref[...] = h.astype(o_ref.dtype)

    return kernel


def fully_connected(x, weights, biases, *, batch_tile=512):
    """Forward pass of the PyTorch FullyConnected module.

    x:       (N, C, H, W) input
    weights: list of (out_i, in_i) nn.Linear weights (PyTorch layout)
    biases:  list of (out_i,) nn.Linear biases
    returns: (N, out_last)
    """
    n = x.shape[0]
    d = math.prod(x.shape[1:])
    x2 = x.reshape(n, d)                       # lane-dense 2-D layout (Flatten)
    num_layers = len(weights)
    out_dim = weights[-1].shape[0]

    # Biggest tile that still tiles large batches; for small N the whole batch
    # is a single grid step (block == full array dims, so the (8,128) rule is
    # satisfied even for tiny N / out_dim).
    tm = n if n <= batch_tile else batch_tile
    grid = (pl.cdiv(n, tm),)

    in_specs = [pl.BlockSpec((tm, d), lambda i: (i, 0))]
    args = [x2]
    for w, b in zip(weights, biases):
        w_t = w.T                 # (in_i, out_i) -> kernel does plain h @ w_t
        b2 = b.reshape(1, -1)     # (1, out_i)
        in_specs.append(pl.BlockSpec(w_t.shape, lambda i: (0, 0)))   # VMEM-resident
        in_specs.append(pl.BlockSpec(b2.shape, lambda i: (0, 0)))    # VMEM-resident
        args += [w_t, b2]
    out_specs = pl.BlockSpec((tm, out_dim), lambda i: (i, 0))

    return pl.pallas_call(
        _make_fc_kernel(num_layers),
        out_shape=jax.ShapeDtypeStruct((n, out_dim), x.dtype),
        grid_spec=pltpu.PrefetchScalarGridSpec(
            num_scalar_prefetch=0,
            grid=grid,
            in_specs=in_specs,
            out_specs=out_specs,
        ),
        compiler_params=pltpu.CompilerParams(
            dimension_semantics=("parallel",),   # lets v7x split the batch grid across its 2 TCs
        ),
    )(*args)


def fully_connected_ref(x, weights, biases):
    """Pure-JAX reference of the PyTorch forward."""
    h = (x - MEAN) / SIGMA
    h = h.reshape(x.shape[0], -1)
    for i, (w, b) in enumerate(zip(weights, biases)):
        h = jnp.dot(h, w.T, precision=jax.lax.Precision.HIGHEST) + b
        if i + 1 < len(weights):
            h = jnp.maximum(h, 0.0)
    return h


if __name__ == "__main__":
    key = jax.random.PRNGKey(0)
    batch, channels, spatial = 2, 1, 16        # input_size = 16 -> flattened dim 256
    fc_layers = (64, 32, 10)

    keys = jax.random.split(key, 1 + 2 * len(fc_layers))
    x = jax.random.normal(keys[0], (batch, channels, spatial, spatial), dtype=jnp.float32)

    weights, biases = [], []
    prev = spatial * spatial
    for i, fc_size in enumerate(fc_layers):
        bound = 1.0 / math.sqrt(prev)
        w = jax.random.uniform(keys[1 + 2 * i], (fc_size, prev), jnp.float32, -bound, bound)
        b = jax.random.uniform(keys[2 + 2 * i], (fc_size,), jnp.float32, -bound, bound)
        weights.append(w)
        biases.append(b)
        prev = fc_size

    out = fully_connected(x, weights, biases)
    jax.block_until_ready(out)

    ref = fully_connected_ref(x, weights, biases)
    assert out.shape == (batch, fc_layers[-1]), f"bad output shape {out.shape}"
    assert jnp.allclose(out, ref, atol=1e-4, rtol=1e-4), "mismatch vs reference"

    print("KERNEL_OK")
</pallas_src>

<mosaic_0001>
module attributes {stable_mosaic.version = 11 : i64} {
  func.func @kernel(%arg0: i32, %arg1: memref<2x256xf32, #tpu.memory_space<vmem>>, %arg2: memref<256x64xf32, #tpu.memory_space<vmem>>, %arg3: memref<1x64xf32, #tpu.memory_space<vmem>>, %arg4: memref<64x32xf32, #tpu.memory_space<vmem>>, %arg5: memref<1x32xf32, #tpu.memory_space<vmem>>, %arg6: memref<32x10xf32, #tpu.memory_space<vmem>>, %arg7: memref<1x10xf32, #tpu.memory_space<vmem>>, %arg8: memref<2x10xf32, #tpu.memory_space<vmem>>) attributes {dimension_semantics = [#tpu.dimension_semantics<parallel>], iteration_bounds = array<i64: 1>, scalar_prefetch = 0 : i64, scratch_operands = 0 : i64, tpu.core_type = #tpu.core_type<tc>, window_params = [{transform_indices = @transform_0, window_bounds = array<i64: 2, 256>}, {pipeline_mode = #tpu.pipeline_mode<synchronous>, transform_indices = @transform_1, window_bounds = array<i64: 256, 64>}, {pipeline_mode = #tpu.pipeline_mode<synchronous>, transform_indices = @transform_2, window_bounds = array<i64: 1, 64>}, {pipeline_mode = #tpu.pipeline_mode<synchronous>, transform_indices = @transform_3, window_bounds = array<i64: 64, 32>}, {pipeline_mode = #tpu.pipeline_mode<synchronous>, transform_indices = @transform_4, window_bounds = array<i64: 1, 32>}, {pipeline_mode = #tpu.pipeline_mode<synchronous>, transform_indices = @transform_5, window_bounds = array<i64: 32, 10>}, {pipeline_mode = #tpu.pipeline_mode<synchronous>, transform_indices = @transform_6, window_bounds = array<i64: 1, 10>}, {transform_indices = @transform_7, window_bounds = array<i64: 2, 10>}]} {
    %c0 = arith.constant 0 : index
    %c0_0 = arith.constant 0 : index
    %0 = vector.load %arg1[%c0, %c0_0] : memref<2x256xf32, #tpu.memory_space<vmem>>, vector<2x256xf32>
    %cst = arith.constant 1.307000e-01 : f32
    %1 = vector.broadcast %cst : f32 to vector<2x256xf32>
    %2 = arith.subf %0, %1 : vector<2x256xf32>
    %cst_1 = arith.constant 3.081000e-01 : f32
    %3 = vector.broadcast %cst_1 : f32 to vector<2x256xf32>
    %4 = arith.divf %2, %3 : vector<2x256xf32>
    %c0_2 = arith.constant 0 : index
    %c0_3 = arith.constant 0 : index
    %5 = vector.load %arg2[%c0_2, %c0_3] : memref<256x64xf32, #tpu.memory_space<vmem>>, vector<256x64xf32>
    %c0_4 = arith.constant 0 : index
    %c0_5 = arith.constant 0 : index
    %6 = vector.load %arg3[%c0_4, %c0_5] : memref<1x64xf32, #tpu.memory_space<vmem>>, vector<1x64xf32>
    %cst_6 = arith.constant dense<0.000000e+00> : vector<2x64xf32>
    %7 = tpu.matmul %4, %5, %cst_6 {dimension_numbers = #tpu.dot_dimension_numbers<[1], [0], [0], [1], [0, 0, 1, 1], [], []>, precision = #tpu.contract_precision<fp32>} : vector<2x256xf32>, vector<256x64xf32>, vector<2x64xf32> -> vector<2x64xf32>
    %8 = vector.broadcast %6 : vector<1x64xf32> to vector<2x64xf32>
    %9 = arith.addf %7, %8 : vector<2x64xf32>
    %cst_7 = arith.constant 0.000000e+00 : f32
    %10 = vector.broadcast %cst_7 : f32 to vector<2x64xf32>
    %11 = arith.maximumf %9, %10 : vector<2x64xf32>
    %c0_8 = arith.constant 0 : index
    %c0_9 = arith.constant 0 : index
    %12 = vector.load %arg4[%c0_8, %c0_9] : memref<64x32xf32, #tpu.memory_space<vmem>>, vector<64x32xf32>
    %c0_10 = arith.constant 0 : index
    %c0_11 = arith.constant 0 : index
    %13 = vector.load %arg5[%c0_10, %c0_11] : memref<1x32xf32, #tpu.memory_space<vmem>>, vector<1x32xf32>
    %cst_12 = arith.constant dense<0.000000e+00> : vector<2x32xf32>
    %14 = tpu.matmul %11, %12, %cst_12 {dimension_numbers = #tpu.dot_dimension_numbers<[1], [0], [0], [1], [0, 0, 1, 1], [], []>, precision = #tpu.contract_precision<fp32>} : vector<2x64xf32>, vector<64x32xf32>, vector<2x32xf32> -> vector<2x32xf32>
    %15 = vector.broadcast %13 : vector<1x32xf32> to vector<2x32xf32>
    %16 = arith.addf %14, %15 : vector<2x32xf32>
    %cst_13 = arith.constant 0.000000e+00 : f32
    %17 = vector.broadcast %cst_13 : f32 to vector<2x32xf32>
    %18 = arith.maximumf %16, %17 : vector<2x32xf32>
    %c0_14 = arith.constant 0 : index
    %c0_15 = arith.constant 0 : index
    %19 = vector.load %arg6[%c0_14, %c0_15] : memref<32x10xf32, #tpu.memory_space<vmem>>, vector<32x10xf32>
    %c0_16 = arith.constant 0 : index
    %c0_17 = arith.constant 0 : index
    %20 = vector.load %arg7[%c0_16, %c0_17] : memref<1x10xf32, #tpu.memory_space<vmem>>, vector<1x10xf32>
    %cst_18 = arith.constant dense<0.000000e+00> : vector<2x10xf32>
    %21 = tpu.matmul %18, %19, %cst_18 {dimension_numbers = #tpu.dot_dimension_numbers<[1], [0], [0], [1], [0, 0, 1, 1], [], []>, precision = #tpu.contract_precision<fp32>} : vector<2x32xf32>, vector<32x10xf32>, vector<2x10xf32> -> vector<2x10xf32>
    %22 = vector.broadcast %20 : vector<1x10xf32> to vector<2x10xf32>
    %23 = arith.addf %21, %22 : vector<2x10xf32>
    %c0_19 = arith.constant 0 : index
    %c0_20 = arith.constant 0 : index
    %24 = vector.load %arg8[%c0_19, %c0_20] : memref<2x10xf32, #tpu.memory_space<vmem>>, vector<2x10xf32>
    tpu.vector_store %arg8[%c0_19, %c0_20], %23 {strides = array<i32>} : memref<2x10xf32, #tpu.memory_space<vmem>>, vector<2x10xf32>,
    return
  }
  func.func @transform_0(%arg0: i32) -> (i32, i32) {
    %c0_i32 = arith.constant 0 : i32
    %c0_i32_0 = arith.constant 0 : i32
    return %arg0, %c0_i32 : i32, i32
  }
  func.func @transform_1(%arg0: i32) -> (i32, i32) {
    %c0_i32 = arith.constant 0 : i32
    %c0_i32_0 = arith.constant 0 : i32
    %c0_i32_1 = arith.constant 0 : i32
    return %c0_i32, %c0_i32_0 : i32, i32
  }
  func.func @transform_2(%arg0: i32) -> (i32, i32) {
    %c0_i32 = arith.constant 0 : i32
    %c0_i32_0 = arith.constant 0 : i32
    %c0_i32_1 = arith.constant 0 : i32
    return %c0_i32, %c0_i32_0 : i32, i32
  }
  func.func @transform_3(%arg0: i32) -> (i32, i32) {
    %c0_i32 = arith.constant 0 : i32
    %c0_i32_0 = arith.constant 0 : i32
    %c0_i32_1 = arith.constant 0 : i32
    return %c0_i32, %c0_i32_0 : i32, i32
  }
  func.func @transform_4(%arg0: i32) -> (i32, i32) {
    %c0_i32 = arith.constant 0 : i32
    %c0_i32_0 = arith.constant 0 : i32
    %c0_i32_1 = arith.constant 0 : i32
    return %c0_i32, %c0_i32_0 : i32, i32
  }
  func.func @transform_5(%arg0: i32) -> (i32, i32) {
    %c0_i32 = arith.constant 0 : i32
    %c0_i32_0 = arith.constant 0 : i32
    %c0_i32_1 = arith.constant 0 : i32
    return %c0_i32, %c0_i32_0 : i32, i32
  }
  func.func @transform_6(%arg0: i32) -> (i32, i32) {
    %c0_i32 = arith.constant 0 : i32
    %c0_i32_0 = arith.constant 0 : i32
    %c0_i32_1 = arith.constant 0 : i32
    return %c0_i32, %c0_i32_0 : i32, i32
  }
  func.func @transform_7(%arg0: i32) -> (i32, i32) {
    %c0_i32 = arith.constant 0 : i32
    %c0_i32_0 = arith.constant 0 : i32
    return %arg0, %c0_i32 : i32, i32
  }
}

</mosaic_0001>

<llo_original>
// kernel: tpu_custom_call.1
$region0: #{tpu_custom_call.1}
  #allocation0 [shape = 'u32[]', space=smem, size = 0x4, offset = 0x4, fixed_abs, tag = 'smem constant byte address 0x4 - core index']
  #allocation1 [shape = 'u32[144,128]{1,0:T(1,128)}', space=vmem, size = 0x12000, scoped, tag = 'internal scratch']
  %s0 = inlined_call_operand.vmem [shape: f32[2,256], index: 0, kind: input, shape index: {}]
  %s1 = inlined_call_operand.vmem [shape: f32[256,64], index: 1, kind: input, shape index: {}]
  %s2 = inlined_call_operand.vmem [shape: f32[1,64], index: 2, kind: input, shape index: {}]
  %s3 = inlined_call_operand.vmem [shape: f32[64,32], index: 3, kind: input, shape index: {}]
  %s4 = inlined_call_operand.vmem [shape: f32[1,32], index: 4, kind: input, shape index: {}]
  %s5 = inlined_call_operand.vmem [shape: f32[32,10], index: 5, kind: input, shape index: {}]
  %s6 = inlined_call_operand.vmem [shape: f32[1,10], index: 6, kind: input, shape index: {}]
  %s7 = inlined_call_operand.hbm [shape: f32[2,10], index: 7, kind: output, shape index: {}]
  %s8 = sld [smem:[#allocation0]]
  $region38: #{tpu_custom_call.1} parent=0
    _
  %s10 = ssub.s32 1, %s8
  %s11 = scalar_select 0, %s10, %s8
  $region1: #{tpu_custom_call.1} parent=0
    #allocation2 [shape = 'u8[1024]{0}', space=vmem, size = 0x400, scoped, tag = 'output window, operand 0, single buffered']
    #allocation3 [shape = 's32[1]{0}', space=sflag, size = 0x4, scoped, tag = 'scoped memory for tpu_custom_call.1']
    %12 = vsyncpa [#allocation3], 0
    // Predicated region
    $region2: #{tpu_custom_call.1} parent=1 // pred_check
      _
    $region3: #{tpu_custom_call.1} parent=1 // pred_check_branch
      %14 = sbr.rel (0) target = $region5
    $region4: #{tpu_custom_call.1} parent=1 // pred_region
      _
    $region5: #{tpu_custom_call.1} parent=1 // pred_fallthru
      _
    // Predicated region
    $region6: #{tpu_custom_call.1} parent=1 // pred_check
      _
    $region7: #{tpu_custom_call.1} parent=1 // pred_check_branch
      %16 = sbr.rel (0) target = $region9
    $region8: #{tpu_custom_call.1} parent=1 // pred_region
      _
    $region9: #{tpu_custom_call.1} parent=1 // pred_fallthru
      _
    // Predicated region
    $region10: #{tpu_custom_call.1} parent=1 // pred_check
      _
    $region11: #{tpu_custom_call.1} parent=1 // pred_check_branch
      %18 = sbr.rel (0) target = $region13
    $region12: #{tpu_custom_call.1} parent=1 // pred_region
      _
    $region13: #{tpu_custom_call.1} parent=1 // pred_fallthru
      _
    // Predicated region
    $region14: #{tpu_custom_call.1} parent=1 // pred_check
      _
    $region15: #{tpu_custom_call.1} parent=1 // pred_check_branch
      %20 = sbr.rel (0) target = $region17
    $region16: #{tpu_custom_call.1} parent=1 // pred_region
      _
    $region17: #{tpu_custom_call.1} parent=1 // pred_fallthru
      _
    // Predicated region
    $region18: #{tpu_custom_call.1} parent=1 // pred_check
      _
    $region19: #{tpu_custom_call.1} parent=1 // pred_check_branch
      %22 = sbr.rel (0) target = $region21
    $region20: #{tpu_custom_call.1} parent=1 // pred_region
      _
    $region21: #{tpu_custom_call.1} parent=1 // pred_fallthru
      _
    // Predicated region
    $region22: #{tpu_custom_call.1} parent=1 // pred_check
      _
    $region23: #{tpu_custom_call.1} parent=1 // pred_check_branch
      %24 = sbr.rel (0) target = $region25
    $region24: #{tpu_custom_call.1} parent=1 // pred_region
      _
    $region25: #{tpu_custom_call.1} parent=1 // pred_fallthru
      _
    // Predicated region
    $region26: #{tpu_custom_call.1} parent=1 // pred_check
      _
    $region27: #{tpu_custom_call.1} parent=1 // pred_check_branch
      %26 = sbr.rel (0) target = $region29
    $region28: #{tpu_custom_call.1} parent=1 // pred_region
      _
    $region29: #{tpu_custom_call.1} parent=1 // pred_fallthru
      _
    %v27 = vld [vmem:[%s0] sm:$0xf]
    %v28 = vsub.f32 %v27, 0.1307
    %v29 = vrcp.pop 0.3081
    %v30 = vmul.f32 %v28, %v29
    %v31 = vld [vmem:[%s1] sm:$0xff]
    %v32 = vld [vmem:[%s1 + $0x8] sm:$0xff]
    %v33 = vld [vmem:[%s1 + $0x10] sm:$0xff]
    %v34 = vld [vmem:[%s1 + $0x18] sm:$0xff]
    %v35 = vld [vmem:[%s1 + $0x20] sm:$0xff]
    %v36 = vld [vmem:[%s1 + $0x28] sm:$0xff]
    %v37 = vld [vmem:[%s1 + $0x30] sm:$0xff]
    %v38 = vld [vmem:[%s1 + $0x38] sm:$0xff]
    %v39 = vld [vmem:[%s1 + $0x40] sm:$0xff]
    %v40 = vld [vmem:[%s1 + $0x48] sm:$0xff]
    %v41 = vld [vmem:[%s1 + $0x50] sm:$0xff]
    %v42 = vld [vmem:[%s1 + $0x58] sm:$0xff]
    %v43 = vld [vmem:[%s1 + $0x60] sm:$0xff]
    %v44 = vld [vmem:[%s1 + $0x68] sm:$0xff]
    %v45 = vld [vmem:[%s1 + $0x70] sm:$0xff]
    %v46 = vld [vmem:[%s1 + $0x78] sm:$0xff]
    %v47 = vld [vmem:[%s1 + $0x80] sm:$0xff]
    %v48 = vld [vmem:[%s1 + $0x88] sm:$0xff]
    %v49 = vld [vmem:[%s1 + $0x90] sm:$0xff]
    %v50 = vld [vmem:[%s1 + $0x98] sm:$0xff]
    %v51 = vld [vmem:[%s1 + $0xa0] sm:$0xff]
    %v52 = vld [vmem:[%s1 + $0xa8] sm:$0xff]
    %v53 = vld [vmem:[%s1 + $0xb0] sm:$0xff]
    %v54 = vld [vmem:[%s1 + $0xb8] sm:$0xff]
    %v55 = vld [vmem:[%s1 + $0xc0] sm:$0xff]
    %v56 = vld [vmem:[%s1 + $0xc8] sm:$0xff]
    %v57 = vld [vmem:[%s1 + $0xd0] sm:$0xff]
    %v58 = vld [vmem:[%s1 + $0xd8] sm:$0xff]
    %v59 = vld [vmem:[%s1 + $0xe0] sm:$0xff]
    %v60 = vld [vmem:[%s1 + $0xe8] sm:$0xff]
    %v61 = vld [vmem:[%s1 + $0xf0] sm:$0xff]
    %v62 = vld [vmem:[%s1 + $0xf8] sm:$0xff]
    %v63 = vld [vmem:[%s2] sm:$0x1]
    %v65 = vlaneseq
    %v66 = vshrl.u32 %v65, 7
    %v67 = vsub.s32 0, %v66
    %v68 = vrot.slane %v63, %v67
    %v72 = vunpack.c.l.s4 1983009808
    %v73 = vunpack.c.0.s8 %v72
    %v74 = vlaneseq
    %v75 = vshrl.u32 %v74, 7
    %v76 = vsub.s32 %v73, %v75
    %v77 = vrot.slane %v30, %v76
    %v78 = vcombine.high %v77, %v77
    %81 = vmatprep.subr.mxu0 0.0
    %v82 = vand.u32 %v31, 4294901760
    %83 = vmatpush1.msra.mxu0 %v82
    %84 = vmatprep.subr.mxu0 0.0
    %v85 = vand.u32 %v32, 4294901760
    %86 = vmatpush1.msra.mxu0 %v85
    %87 = vmatprep.subr.mxu0 0.0
    %v88 = vand.u32 %v33, 4294901760
    %89 = vmatpush1.msra.mxu0 %v88
    %90 = vmatprep.subr.mxu0 0.0
    %v91 = vand.u32 %v34, 4294901760
    %92 = vmatpush1.msra.mxu0 %v91
    %93 = vmatprep.subr.mxu0 0.0
    %v94 = vand.u32 %v35, 4294901760
    %95 = vmatpush1.msra.mxu0 %v94
    %96 = vmatprep.subr.mxu0 0.0
    %v97 = vand.u32 %v36, 4294901760
    %98 = vmatpush1.msra.mxu0 %v97
    %99 = vmatprep.subr.mxu0 0.0
    %v100 = vand.u32 %v37, 4294901760
    %101 = vmatpush1.msra.mxu0 %v100
    %102 = vmatprep.subr.mxu0 0.0
    %v103 = vand.u32 %v38, 4294901760
    %104 = vmatpush1.msra.mxu0 %v103
    %105 = vmatprep.subr.mxu0 0.0
    %v106 = vand.u32 %v39, 4294901760
    %107 = vmatpush1.msra.mxu0 %v106
    %108 = vmatprep.subr.mxu0 0.0
    %v109 = vand.u32 %v40, 4294901760
    %110 = vmatpush1.msra.mxu0 %v109
    %111 = vmatprep.subr.mxu0 0.0
    %v112 = vand.u32 %v41, 4294901760
    %113 = vmatpush1.msra.mxu0 %v112
    %114 = vmatprep.subr.mxu0 0.0
    %v115 = vand.u32 %v42, 4294901760
    %116 = vmatpush1.msra.mxu0 %v115
    %117 = vmatprep.subr.mxu0 0.0
    %v118 = vand.u32 %v43, 4294901760
    %119 = vmatpush1.msra.mxu0 %v118
    %120 = vmatprep.subr.mxu0 0.0
    %v121 = vand.u32 %v44, 4294901760
    %122 = vmatpush1.msra.mxu0 %v121
    %123 = vmatprep.subr.mxu0 0.0
    %v124 = vand.u32 %v45, 4294901760
    %125 = vmatpush1.msra.mxu0 %v124
    %126 = vmatprep.subr.mxu0 0.0
    %v127 = vand.u32 %v46, 4294901760
    %128 = vmatpush1.msra.mxu0 %v127
    %129 = vmatprep.subr.mxu0 0.0
    %v130 = vand.u32 %v47, 4294901760
    %131 = vmatpush1.msra.mxu0 %v130
    %132 = vmatprep.subr.mxu0 0.0
    %v133 = vand.u32 %v48, 4294901760
    %134 = vmatpush1.msra.mxu0 %v133
    %135 = vmatprep.subr.mxu0 0.0
    %v136 = vand.u32 %v49, 4294901760
    %137 = vmatpush1.msra.mxu0 %v136
    %138 = vmatprep.subr.mxu0 0.0
    %v139 = vand.u32 %v50, 4294901760
    %140 = vmatpush1.msra.mxu0 %v139
    %141 = vmatprep.subr.mxu0 0.0
    %v142 = vand.u32 %v51, 4294901760
    %143 = vmatpush1.msra.mxu0 %v142
    %144 = vmatprep.subr.mxu0 0.0
    %v145 = vand.u32 %v52, 4294901760
    %146 = vmatpush1.msra.mxu0 %v145
    %147 = vmatprep.subr.mxu0 0.0
    %v148 = vand.u32 %v53, 4294901760
    %149 = vmatpush1.msra.mxu0 %v148
    %150 = vmatprep.subr.mxu0 0.0
    %v151 = vand.u32 %v54, 4294901760
    %152 = vmatpush1.msra.mxu0 %v151
    %153 = vmatprep.subr.mxu0 0.0
    %v154 = vand.u32 %v55, 4294901760
    %155 = vmatpush1.msra.mxu0 %v154
    %156 = vmatprep.subr.mxu0 0.0
    %v157 = vand.u32 %v56, 4294901760
    %158 = vmatpush1.msra.mxu0 %v157
    %159 = vmatprep.subr.mxu0 0.0
    %v160 = vand.u32 %v57, 4294901760
    %161 = vmatpush1.msra.mxu0 %v160
    %162 = vmatprep.subr.mxu0 0.0
    %v163 = vand.u32 %v58, 4294901760
    %164 = vmatpush1.msra.mxu0 %v163
    %165 = vmatprep.subr.mxu0 0.0
    %v166 = vand.u32 %v59, 4294901760
    %167 = vmatpush1.msra.mxu0 %v166
    %168 = vmatprep.subr.mxu0 0.0
    %v169 = vand.u32 %v60, 4294901760
    %170 = vmatpush1.msra.mxu0 %v169
    %171 = vmatprep.subr.mxu0 0.0
    %v172 = vand.u32 %v61, 4294901760
    %173 = vmatpush1.msra.mxu0 %v172
    %174 = vmatprep.subr.mxu0 0.0
    %v175 = vand.u32 %v62, 4294901760
    %176 = vmatpush1.msra.mxu0 %v175
    %v177 = vand.u32 %v78, 4294901760
    %v178 = vsub.f32 %v78, %v177
    %v179 = vand.u32 %v178, 4294901760
    %v180 = vsub.f32 %v178, %v179
    %v181 = vand.u32 %v180, 4294901760
    %182 = vmatprep.mubr.f32.mxu0 %v181
    %v183 = vand.u32 %v77, 4294901760
    %v184 = vsub.f32 %v77, %v183
    %v185 = vand.u32 %v184, 4294901760
    %v186 = vsub.f32 %v184, %v185
    %v187 = vand.u32 %v186, 4294901760
    %188 = vmatmul.mubr.f32.gmra.mrb[0].mxu0 %v187
    %v189 = vpop.f32.mrb[0].mxu0
    %v190 = vadd.f32 %v68, %v189
    %v191 = vpop.f32.mrb[0].mxu0
    %192 = vdwg.mxu0
    %193 = vmatprep.subr.mxu0 0.0
    %v194 = vand.u32 %v31, 4294901760
    %v195 = vsub.f32 %v31, %v194
    %v196 = vand.u32 %v195, 4294901760
    %v197 = vsub.f32 %v195, %v196
    %v198 = vand.u32 %v197, 4294901760
    %199 = vmatpush1.msra.mxu0 %v198
    %200 = vmatprep.subr.mxu0 0.0
    %v201 = vand.u32 %v32, 4294901760
    %v202 = vsub.f32 %v32, %v201
    %v203 = vand.u32 %v202, 4294901760
    %v204 = vsub.f32 %v202, %v203
    %v205 = vand.u32 %v204, 4294901760
    %206 = vmatpush1.msra.mxu0 %v205
    %207 = vmatprep.subr.mxu0 0.0
    %v208 = vand.u32 %v33, 4294901760
    %v209 = vsub.f32 %v33, %v208
    %v210 = vand.u32 %v209, 4294901760
    %v211 = vsub.f32 %v209, %v210
    %v212 = vand.u32 %v211, 4294901760
    %213 = vmatpush1.msra.mxu0 %v212
    %214 = vmatprep.subr.mxu0 0.0
    %v215 = vand.u32 %v34, 4294901760
    %v216 = vsub.f32 %v34, %v215
    %v217 = vand.u32 %v216, 4294901760
    %v218 = vsub.f32 %v216, %v217
    %v219 = vand.u32 %v218, 4294901760
    %220 = vmatpush1.msra.mxu0 %v219
    %221 = vmatprep.subr.mxu0 0.0
    %v222 = vand.u32 %v35, 4294901760
    %v223 = vsub.f32 %v35, %v222
    %v224 = vand.u32 %v223, 4294901760
    %v225 = vsub.f32 %v223, %v224
    %v226 = vand.u32 %v225, 4294901760
    %227 = vmatpush1.msra.mxu0 %v226
    %228 = vmatprep.subr.mxu0 0.0
    %v229 = vand.u32 %v36, 4294901760
    %v230 = vsub.f32 %v36, %v229
    %v231 = vand.u32 %v230, 4294901760
    %v232 = vsub.f32 %v230, %v231
    %v233 = vand.u32 %v232, 4294901760
    %234 = vmatpush1.msra.mxu0 %v233
    %235 = vmatprep.subr.mxu0 0.0
    %v236 = vand.u32 %v37, 4294901760
    %v237 = vsub.f32 %v37, %v236
    %v238 = vand.u32 %v237, 4294901760
    %v239 = vsub.f32 %v237, %v238
    %v240 = vand.u32 %v239, 4294901760
    %241 = vmatpush1.msra.mxu0 %v240
    %242 = vmatprep.subr.mxu0 0.0
    %v243 = vand.u32 %v38, 4294901760
    %v244 = vsub.f32 %v38, %v243
    %v245 = vand.u32 %v244, 4294901760
    %v246 = vsub.f32 %v244, %v245
    %v247 = vand.u32 %v246, 4294901760
    %248 = vmatpush1.msra.mxu0 %v247
    %249 = vmatprep.subr.mxu0 0.0
    %v250 = vand.u32 %v39, 4294901760
    %v251 = vsub.f32 %v39, %v250
    %v252 = vand.u32 %v251, 4294901760
    %v253 = vsub.f32 %v251, %v252
    %v254 = vand.u32 %v253, 4294901760
    %255 = vmatpush1.msra.mxu0 %v254
    %256 = vmatprep.subr.mxu0 0.0
    %v257 = vand.u32 %v40, 4294901760
    %v258 = vsub.f32 %v40, %v257
    %v259 = vand.u32 %v258, 4294901760
    %v260 = vsub.f32 %v258, %v259
    %v261 = vand.u32 %v260, 4294901760
    %262 = vmatpush1.msra.mxu0 %v261
    %263 = vmatprep.subr.mxu0 0.0
    %v264 = vand.u32 %v41, 4294901760
    %v265 = vsub.f32 %v41, %v264
    %v266 = vand.u32 %v265, 4294901760
    %v267 = vsub.f32 %v265, %v266
    %v268 = vand.u32 %v267, 4294901760
    %269 = vmatpush1.msra.mxu0 %v268
    %270 = vmatprep.subr.mxu0 0.0
    %v271 = vand.u32 %v42, 4294901760
    %v272 = vsub.f32 %v42, %v271
    %v273 = vand.u32 %v272, 4294901760
    %v274 = vsub.f32 %v272, %v273
    %v275 = vand.u32 %v274, 4294901760
    %276 = vmatpush1.msra.mxu0 %v275
    %277 = vmatprep.subr.mxu0 0.0
    %v278 = vand.u32 %v43, 4294901760
    %v279 = vsub.f32 %v43, %v278
    %v280 = vand.u32 %v279, 4294901760
    %v281 = vsub.f32 %v279, %v280
    %v282 = vand.u32 %v281, 4294901760
    %283 = vmatpush1.msra.mxu0 %v282
    %284 = vmatprep.subr.mxu0 0.0
    %v285 = vand.u32 %v44, 4294901760
    %v286 = vsub.f32 %v44, %v285
    %v287 = vand.u32 %v286, 4294901760
    %v288 = vsub.f32 %v286, %v287
    %v289 = vand.u32 %v288, 4294901760
    %290 = vmatpush1.msra.mxu0 %v289
    %291 = vmatprep.subr.mxu0 0.0
    %v292 = vand.u32 %v45, 4294901760
    %v293 = vsub.f32 %v45, %v292
    %v294 = vand.u32 %v293, 4294901760
    %v295 = vsub.f32 %v293, %v294
    %v296 = vand.u32 %v295, 4294901760
    %297 = vmatpush1.msra.mxu0 %v296
    %298 = vmatprep.subr.mxu0 0.0
    %v299 = vand.u32 %v46, 4294901760
    %v300 = vsub.f32 %v46, %v299
    %v301 = vand.u32 %v300, 4294901760
    %v302 = vsub.f32 %v300, %v301
    %v303 = vand.u32 %v302, 4294901760
    %304 = vmatpush1.msra.mxu0 %v303
    %305 = vmatprep.subr.mxu0 0.0
    %v306 = vand.u32 %v47, 4294901760
    %v307 = vsub.f32 %v47, %v306
    %v308 = vand.u32 %v307, 4294901760
    %v309 = vsub.f32 %v307, %v308
    %v310 = vand.u32 %v309, 4294901760
    %311 = vmatpush1.msra.mxu0 %v310
    %312 = vmatprep.subr.mxu0 0.0
    %v313 = vand.u32 %v48, 4294901760
    %v314 = vsub.f32 %v48, %v313
    %v315 = vand.u32 %v314, 4294901760
    %v316 = vsub.f32 %v314, %v315
    %v317 = vand.u32 %v316, 4294901760
    %318 = vmatpush1.msra.mxu0 %v317
    %319 = vmatprep.subr.mxu0 0.0
    %v320 = vand.u32 %v49, 4294901760
    %v321 = vsub.f32 %v49, %v320
    %v322 = vand.u32 %v321, 4294901760
    %v323 = vsub.f32 %v321, %v322
    %v324 = vand.u32 %v323, 4294901760
    %325 = vmatpush1.msra.mxu0 %v324
    %326 = vmatprep.subr.mxu0 0.0
    %v327 = vand.u32 %v50, 4294901760
    %v328 = vsub.f32 %v50, %v327
    %v329 = vand.u32 %v328, 4294901760
    %v330 = vsub.f32 %v328, %v329
    %v331 = vand.u32 %v330, 4294901760
    %332 = vmatpush1.msra.mxu0 %v331
    %333 = vmatprep.subr.mxu0 0.0
    %v334 = vand.u32 %v51, 4294901760
    %v335 = vsub.f32 %v51, %v334
    %v336 = vand.u32 %v335, 4294901760
    %v337 = vsub.f32 %v335, %v336
    %v338 = vand.u32 %v337, 4294901760
    %339 = vmatpush1.msra.mxu0 %v338
    %340 = vmatprep.subr.mxu0 0.0
    %v341 = vand.u32 %v52, 4294901760
    %v342 = vsub.f32 %v52, %v341
    %v343 = vand.u32 %v342, 4294901760
    %v344 = vsub.f32 %v342, %v343
    %v345 = vand.u32 %v344, 4294901760
    %346 = vmatpush1.msra.mxu0 %v345
    %347 = vmatprep.subr.mxu0 0.0
    %v348 = vand.u32 %v53, 4294901760
    %v349 = vsub.f32 %v53, %v348
    %v350 = vand.u32 %v349, 4294901760
    %v351 = vsub.f32 %v349, %v350
    %v352 = vand.u32 %v351, 4294901760
    %353 = vmatpush1.msra.mxu0 %v352
    %354 = vmatprep.subr.mxu0 0.0
    %v355 = vand.u32 %v54, 4294901760
    %v356 = vsub.f32 %v54, %v355
    %v357 = vand.u32 %v356, 4294901760
    %v358 = vsub.f32 %v356, %v357
    %v359 = vand.u32 %v358, 4294901760
    %360 = vmatpush1.msra.mxu0 %v359
    %361 = vmatprep.subr.mxu0 0.0
    %v362 = vand.u32 %v55, 4294901760
    %v363 = vsub.f32 %v55, %v362
    %v364 = vand.u32 %v363, 4294901760
    %v365 = vsub.f32 %v363, %v364
    %v366 = vand.u32 %v365, 4294901760
    %367 = vmatpush1.msra.mxu0 %v366
    %368 = vmatprep.subr.mxu0 0.0
    %v369 = vand.u32 %v56, 4294901760
    %v370 = vsub.f32 %v56, %v369
    %v371 = vand.u32 %v370, 4294901760
    %v372 = vsub.f32 %v370, %v371
    %v373 = vand.u32 %v372, 4294901760
    %374 = vmatpush1.msra.mxu0 %v373
    %375 = vmatprep.subr.mxu0 0.0
    %v376 = vand.u32 %v57, 4294901760
    %v377 = vsub.f32 %v57, %v376
    %v378 = vand.u32 %v377, 4294901760
    %v379 = vsub.f32 %v377, %v378
    %v380 = vand.u32 %v379, 4294901760
    %381 = vmatpush1.msra.mxu0 %v380
    %382 = vmatprep.subr.mxu0 0.0
    %v383 = vand.u32 %v58, 4294901760
    %v384 = vsub.f32 %v58, %v383
    %v385 = vand.u32 %v384, 4294901760
    %v386 = vsub.f32 %v384, %v385
    %v387 = vand.u32 %v386, 4294901760
    %388 = vmatpush1.msra.mxu0 %v387
    %389 = vmatprep.subr.mxu0 0.0
    %v390 = vand.u32 %v59, 4294901760
    %v391 = vsub.f32 %v59, %v390
    %v392 = vand.u32 %v391, 4294901760
    %v393 = vsub.f32 %v391, %v392
    %v394 = vand.u32 %v393, 4294901760
    %395 = vmatpush1.msra.mxu0 %v394
    %396 = vmatprep.subr.mxu0 0.0
    %v397 = vand.u32 %v60, 4294901760
    %v398 = vsub.f32 %v60, %v397
    %v399 = vand.u32 %v398, 4294901760
    %v400 = vsub.f32 %v398, %v399
    %v401 = vand.u32 %v400, 4294901760
    %402 = vmatpush1.msra.mxu0 %v401
    %403 = vmatprep.subr.mxu0 0.0
    %v404 = vand.u32 %v61, 4294901760
    %v405 = vsub.f32 %v61, %v404
    %v406 = vand.u32 %v405, 4294901760
    %v407 = vsub.f32 %v405, %v406
    %v408 = vand.u32 %v407, 4294901760
    %409 = vmatpush1.msra.mxu0 %v408
    %410 = vmatprep.subr.mxu0 0.0
    %v411 = vand.u32 %v62, 4294901760
    %v412 = vsub.f32 %v62, %v411
    %v413 = vand.u32 %v412, 4294901760
    %v414 = vsub.f32 %v412, %v413
    %v415 = vand.u32 %v414, 4294901760
    %416 = vmatpush1.msra.mxu0 %v415
    %v417 = vand.u32 %v78, 4294901760
    %418 = vmatprep.mubr.f32.mxu0 %v417
    %v419 = vand.u32 %v77, 4294901760
    %420 = vmatmul.mubr.f32.gmra.mrb[0].mxu0 %v419
    %v421 = vpop.f32.mrb[0].mxu0
    %v422 = vadd.f32 %v190, %v421
    %v423 = vpop.f32.mrb[0].mxu0
    %424 = vdwg.mxu0
    %425 = vmatprep.subr.mxu0 0.0
    %v426 = vand.u32 %v31, 4294901760
    %v427 = vsub.f32 %v31, %v426
    %428 = vmatpush1.msra.mxu0 %v427
    %429 = vmatprep.subr.mxu0 0.0
    %v430 = vand.u32 %v32, 4294901760
    %v431 = vsub.f32 %v32, %v430
    %432 = vmatpush1.msra.mxu0 %v431
    %433 = vmatprep.subr.mxu0 0.0
    %v434 = vand.u32 %v33, 4294901760
    %v435 = vsub.f32 %v33, %v434
    %436 = vmatpush1.msra.mxu0 %v435
    %437 = vmatprep.subr.mxu0 0.0
    %v438 = vand.u32 %v34, 4294901760
    %v439 = vsub.f32 %v34, %v438
    %440 = vmatpush1.msra.mxu0 %v439
    %441 = vmatprep.subr.mxu0 0.0
    %v442 = vand.u32 %v35, 4294901760
    %v443 = vsub.f32 %v35, %v442
    %444 = vmatpush1.msra.mxu0 %v443
    %445 = vmatprep.subr.mxu0 0.0
    %v446 = vand.u32 %v36, 4294901760
    %v447 = vsub.f32 %v36, %v446
    %448 = vmatpush1.msra.mxu0 %v447
    %449 = vmatprep.subr.mxu0 0.0
    %v450 = vand.u32 %v37, 4294901760
    %v451 = vsub.f32 %v37, %v450
    %452 = vmatpush1.msra.mxu0 %v451
    %453 = vmatprep.subr.mxu0 0.0
    %v454 = vand.u32 %v38, 4294901760
    %v455 = vsub.f32 %v38, %v454
    %456 = vmatpush1.msra.mxu0 %v455
    %457 = vmatprep.subr.mxu0 0.0
    %v458 = vand.u32 %v39, 4294901760
    %v459 = vsub.f32 %v39, %v458
    %460 = vmatpush1.msra.mxu0 %v459
    %461 = vmatprep.subr.mxu0 0.0
    %v462 = vand.u32 %v40, 4294901760
    %v463 = vsub.f32 %v40, %v462
    %464 = vmatpush1.msra.mxu0 %v463
    %465 = vmatprep.subr.mxu0 0.0
    %v466 = vand.u32 %v41, 4294901760
    %v467 = vsub.f32 %v41, %v466
    %468 = vmatpush1.msra.mxu0 %v467
    %469 = vmatprep.subr.mxu0 0.0
    %v470 = vand.u32 %v42, 4294901760
    %v471 = vsub.f32 %v42, %v470
    %472 = vmatpush1.msra.mxu0 %v471
    %473 = vmatprep.subr.mxu0 0.0
    %v474 = vand.u32 %v43, 4294901760
    %v475 = vsub.f32 %v43, %v474
    %476 = vmatpush1.msra.mxu0 %v475
    %477 = vmatprep.subr.mxu0 0.0
    %v478 = vand.u32 %v44, 4294901760
    %v479 = vsub.f32 %v44, %v478
    %480 = vmatpush1.msra.mxu0 %v479
    %481 = vmatprep.subr.mxu0 0.0
    %v482 = vand.u32 %v45, 4294901760
    %v483 = vsub.f32 %v45, %v482
    %484 = vmatpush1.msra.mxu0 %v483
    %485 = vmatprep.subr.mxu0 0.0
    %v486 = vand.u32 %v46, 4294901760
    %v487 = vsub.f32 %v46, %v486
    %488 = vmatpush1.msra.mxu0 %v487
    %489 = vmatprep.subr.mxu0 0.0
    %v490 = vand.u32 %v47, 4294901760
    %v491 = vsub.f32 %v47, %v490
    %492 = vmatpush1.msra.mxu0 %v491
    %493 = vmatprep.subr.mxu0 0.0
    %v494 = vand.u32 %v48, 4294901760
    %v495 = vsub.f32 %v48, %v494
    %496 = vmatpush1.msra.mxu0 %v495
    %497 = vmatprep.subr.mxu0 0.0
    %v498 = vand.u32 %v49, 4294901760
    %v499 = vsub.f32 %v49, %v498
    %500 = vmatpush1.msra.mxu0 %v499
    %501 = vmatprep.subr.mxu0 0.0
    %v502 = vand.u32 %v50, 4294901760
    %v503 = vsub.f32 %v50, %v502
    %504 = vmatpush1.msra.mxu0 %v503
    %505 = vmatprep.subr.mxu0 0.0
    %v506 = vand.u32 %v51, 4294901760
    %v507 = vsub.f32 %v51, %v506
    %508 = vmatpush1.msra.mxu0 %v507
    %509 = vmatprep.subr.mxu0 0.0
    %v510 = vand.u32 %v52, 4294901760
    %v511 = vsub.f32 %v52, %v510
    %512 = vmatpush1.msra.mxu0 %v511
    %513 = vmatprep.subr.mxu0 0.0
    %v514 = vand.u32 %v53, 4294901760
    %v515 = vsub.f32 %v53, %v514
    %516 = vmatpush1.msra.mxu0 %v515
    %517 = vmatprep.subr.mxu0 0.0
    %v518 = vand.u32 %v54, 4294901760
    %v519 = vsub.f32 %v54, %v518
    %520 = vmatpush1.msra.mxu0 %v519
    %521 = vmatprep.subr.mxu0 0.0
    %v522 = vand.u32 %v55, 4294901760
    %v523 = vsub.f32 %v55, %v522
    %524 = vmatpush1.msra.mxu0 %v523
    %525 = vmatprep.subr.mxu0 0.0
    %v526 = vand.u32 %v56, 4294901760
    %v527 = vsub.f32 %v56, %v526
    %528 = vmatpush1.msra.mxu0 %v527
    %529 = vmatprep.subr.mxu0 0.0
    %v530 = vand.u32 %v57, 4294901760
    %v531 = vsub.f32 %v57, %v530
    %532 = vmatpush1.msra.mxu0 %v531
    %533 = vmatprep.subr.mxu0 0.0
    %v534 = vand.u32 %v58, 4294901760
    %v535 = vsub.f32 %v58, %v534
    %536 = vmatpush1.msra.mxu0 %v535
    %537 = vmatprep.subr.mxu0 0.0
    %v538 = vand.u32 %v59, 4294901760
    %v539 = vsub.f32 %v59, %v538
    %540 = vmatpush1.msra.mxu0 %v539
    %541 = vmatprep.subr.mxu0 0.0
    %v542 = vand.u32 %v60, 4294901760
    %v543 = vsub.f32 %v60, %v542
    %544 = vmatpush1.msra.mxu0 %v543
    %545 = vmatprep.subr.mxu0 0.0
    %v546 = vand.u32 %v61, 4294901760
    %v547 = vsub.f32 %v61, %v546
    %548 = vmatpush1.msra.mxu0 %v547
    %549 = vmatprep.subr.mxu0 0.0
    %v550 = vand.u32 %v62, 4294901760
    %v551 = vsub.f32 %v62, %v550
    %552 = vmatpush1.msra.mxu0 %v551
    %v553 = vand.u32 %v78, 4294901760
    %v554 = vsub.f32 %v78, %v553
    %555 = vmatprep.mubr.f32.mxu0 %v554
    %v556 = vand.u32 %v77, 4294901760
    %v557 = vsub.f32 %v77, %v556
    %558 = vmatmul.mubr.f32.gmra.mrb[0].mxu0 %v557
    %v559 = vpop.f32.mrb[0].mxu0
    %v560 = vadd.f32 %v422, %v559
    %v561 = vpop.f32.mrb[0].mxu0
    %562 = vdwg.mxu0
    %563 = vmatprep.subr.mxu0 0.0
    %v564 = vand.u32 %v31, 4294901760
    %565 = vmatpush1.msra.mxu0 %v564
    %566 = vmatprep.subr.mxu0 0.0
    %v567 = vand.u32 %v32, 4294901760
    %568 = vmatpush1.msra.mxu0 %v567
    %569 = vmatprep.subr.mxu0 0.0
    %v570 = vand.u32 %v33, 4294901760
    %571 = vmatpush1.msra.mxu0 %v570
    %572 = vmatprep.subr.mxu0 0.0
    %v573 = vand.u32 %v34, 4294901760
    %574 = vmatpush1.msra.mxu0 %v573
    %575 = vmatprep.subr.mxu0 0.0
    %v576 = vand.u32 %v35, 4294901760
    %577 = vmatpush1.msra.mxu0 %v576
    %578 = vmatprep.subr.mxu0 0.0
    %v579 = vand.u32 %v36, 4294901760
    %580 = vmatpush1.msra.mxu0 %v579
    %581 = vmatprep.subr.mxu0 0.0
    %v582 = vand.u32 %v37, 4294901760
    %583 = vmatpush1.msra.mxu0 %v582
    %584 = vmatprep.subr.mxu0 0.0
    %v585 = vand.u32 %v38, 4294901760
    %586 = vmatpush1.msra.mxu0 %v585
    %587 = vmatprep.subr.mxu0 0.0
    %v588 = vand.u32 %v39, 4294901760
    %589 = vmatpush1.msra.mxu0 %v588
    %590 = vmatprep.subr.mxu0 0.0
    %v591 = vand.u32 %v40, 4294901760
    %592 = vmatpush1.msra.mxu0 %v591
    %593 = vmatprep.subr.mxu0 0.0
    %v594 = vand.u32 %v41, 4294901760
    %595 = vmatpush1.msra.mxu0 %v594
    %596 = vmatprep.subr.mxu0 0.0
    %v597 = vand.u32 %v42, 4294901760
    %598 = vmatpush1.msra.mxu0 %v597
    %599 = vmatprep.subr.mxu0 0.0
    %v600 = vand.u32 %v43, 4294901760
    %601 = vmatpush1.msra.mxu0 %v600
    %602 = vmatprep.subr.mxu0 0.0
    %v603 = vand.u32 %v44, 4294901760
    %604 = vmatpush1.msra.mxu0 %v603
    %605 = vmatprep.subr.mxu0 0.0
    %v606 = vand.u32 %v45, 4294901760
    %607 = vmatpush1.msra.mxu0 %v606
    %608 = vmatprep.subr.mxu0 0.0
    %v609 = vand.u32 %v46, 4294901760
    %610 = vmatpush1.msra.mxu0 %v609
    %611 = vmatprep.subr.mxu0 0.0
    %v612 = vand.u32 %v47, 4294901760
    %613 = vmatpush1.msra.mxu0 %v612
    %614 = vmatprep.subr.mxu0 0.0
    %v615 = vand.u32 %v48, 4294901760
    %616 = vmatpush1.msra.mxu0 %v615
    %617 = vmatprep.subr.mxu0 0.0
    %v618 = vand.u32 %v49, 4294901760
    %619 = vmatpush1.msra.mxu0 %v618
    %620 = vmatprep.subr.mxu0 0.0
    %v621 = vand.u32 %v50, 4294901760
    %622 = vmatpush1.msra.mxu0 %v621
    %623 = vmatprep.subr.mxu0 0.0
    %v624 = vand.u32 %v51, 4294901760
    %625 = vmatpush1.msra.mxu0 %v624
    %626 = vmatprep.subr.mxu0 0.0
    %v627 = vand.u32 %v52, 4294901760
    %628 = vmatpush1.msra.mxu0 %v627
    %629 = vmatprep.subr.mxu0 0.0
    %v630 = vand.u32 %v53, 4294901760
    %631 = vmatpush1.msra.mxu0 %v630
    %632 = vmatprep.subr.mxu0 0.0
    %v633 = vand.u32 %v54, 4294901760
    %634 = vmatpush1.msra.mxu0 %v633
    %635 = vmatprep.subr.mxu0 0.0
    %v636 = vand.u32 %v55, 4294901760
    %637 = vmatpush1.msra.mxu0 %v636
    %638 = vmatprep.subr.mxu0 0.0
    %v639 = vand.u32 %v56, 4294901760
    %640 = vmatpush1.msra.mxu0 %v639
    %641 = vmatprep.subr.mxu0 0.0
    %v642 = vand.u32 %v57, 4294901760
    %643 = vmatpush1.msra.mxu0 %v642
    %644 = vmatprep.subr.mxu0 0.0
    %v645 = vand.u32 %v58, 4294901760
    %646 = vmatpush1.msra.mxu0 %v645
    %647 = vmatprep.subr.mxu0 0.0
    %v648 = vand.u32 %v59, 4294901760
    %649 = vmatpush1.msra.mxu0 %v648
    %650 = vmatprep.subr.mxu0 0.0
    %v651 = vand.u32 %v60, 4294901760
    %652 = vmatpush1.msra.mxu0 %v651
    %653 = vmatprep.subr.mxu0 0.0
    %v654 = vand.u32 %v61, 4294901760
    %655 = vmatpush1.msra.mxu0 %v654
    %656 = vmatprep.subr.mxu0 0.0
    %v657 = vand.u32 %v62, 4294901760
    %658 = vmatpush1.msra.mxu0 %v657
    %v659 = vand.u32 %v78, 4294901760
    %v660 = vsub.f32 %v78, %v659
    %v661 = vand.u32 %v660, 4294901760
    %662 = vmatprep.mubr.f32.mxu0 %v661
    %v663 = vand.u32 %v77, 4294901760
    %v664 = vsub.f32 %v77, %v663
    %v665 = vand.u32 %v664, 4294901760
    %666 = vmatmul.mubr.f32.gmra.mrb[0].mxu0 %v665
    %v667 = vpop.f32.mrb[0].mxu0
    %v668 = vadd.f32 %v560, %v667
    %v669 = vpop.f32.mrb[0].mxu0
    %670 = vdwg.mxu0
    %671 = vmatprep.subr.mxu0 0.0
    %v672 = vand.u32 %v31, 4294901760
    %v673 = vsub.f32 %v31, %v672
    %v674 = vand.u32 %v673, 4294901760
    %675 = vmatpush1.msra.mxu0 %v674
    %676 = vmatprep.subr.mxu0 0.0
    %v677 = vand.u32 %v32, 4294901760
    %v678 = vsub.f32 %v32, %v677
    %v679 = vand.u32 %v678, 4294901760
    %680 = vmatpush1.msra.mxu0 %v679
    %681 = vmatprep.subr.mxu0 0.0
    %v682 = vand.u32 %v33, 4294901760
    %v683 = vsub.f32 %v33, %v682
    %v684 = vand.u32 %v683, 4294901760
    %685 = vmatpush1.msra.mxu0 %v684
    %686 = vmatprep.subr.mxu0 0.0
    %v687 = vand.u32 %v34, 4294901760
    %v688 = vsub.f32 %v34, %v687
    %v689 = vand.u32 %v688, 4294901760
    %690 = vmatpush1.msra.mxu0 %v689
    %691 = vmatprep.subr.mxu0 0.0
    %v692 = vand.u32 %v35, 4294901760
    %v693 = vsub.f32 %v35, %v692
    %v694 = vand.u32 %v693, 4294901760
    %695 = vmatpush1.msra.mxu0 %v694
    %696 = vmatprep.subr.mxu0 0.0
    %v697 = vand.u32 %v36, 4294901760
    %v698 = vsub.f32 %v36, %v697
    %v699 = vand.u32 %v698, 4294901760
    %700 = vmatpush1.msra.mxu0 %v699
    %701 = vmatprep.subr.mxu0 0.0
    %v702 = vand.u32 %v37, 4294901760
    %v703 = vsub.f32 %v37, %v702
    %v704 = vand.u32 %v703, 4294901760
    %705 = vmatpush1.msra.mxu0 %v704
    %706 = vmatprep.subr.mxu0 0.0
    %v707 = vand.u32 %v38, 4294901760
    %v708 = vsub.f32 %v38, %v707
    %v709 = vand.u32 %v708, 4294901760
    %710 = vmatpush1.msra.mxu0 %v709
    %711 = vmatprep.subr.mxu0 0.0
    %v712 = vand.u32 %v39, 4294901760
    %v713 = vsub.f32 %v39, %v712
    %v714 = vand.u32 %v713, 4294901760
    %715 = vmatpush1.msra.mxu0 %v714
    %716 = vmatprep.subr.mxu0 0.0
    %v717 = vand.u32 %v40, 4294901760
    %v718 = vsub.f32 %v40, %v717
    %v719 = vand.u32 %v718, 4294901760
    %720 = vmatpush1.msra.mxu0 %v719
    %721 = vmatprep.subr.mxu0 0.0
    %v722 = vand.u32 %v41, 4294901760
    %v723 = vsub.f32 %v41, %v722
    %v724 = vand.u32 %v723, 4294901760
    %725 = vmatpush1.msra.mxu0 %v724
    %726 = vmatprep.subr.mxu0 0.0
    %v727 = vand.u32 %v42, 4294901760
    %v728 = vsub.f32 %v42, %v727
    %v729 = vand.u32 %v728, 4294901760
    %730 = vmatpush1.msra.mxu0 %v729
    %731 = vmatprep.subr.mxu0 0.0
    %v732 = vand.u32 %v43, 4294901760
    %v733 = vsub.f32 %v43, %v732
    %v734 = vand.u32 %v733, 4294901760
    %735 = vmatpush1.msra.mxu0 %v734
    %736 = vmatprep.subr.mxu0 0.0
    %v737 = vand.u32 %v44, 4294901760
    %v738 = vsub.f32 %v44, %v737
    %v739 = vand.u32 %v738, 4294901760
    %740 = vmatpush1.msra.mxu0 %v739
    %741 = vmatprep.subr.mxu0 0.0
    %v742 = vand.u32 %v45, 4294901760
    %v743 = vsub.f32 %v45, %v742
    %v744 = vand.u32 %v743, 4294901760
    %745 = vmatpush1.msra.mxu0 %v744
    %746 = vmatprep.subr.mxu0 0.0
    %v747 = vand.u32 %v46, 4294901760
    %v748 = vsub.f32 %v46, %v747
    %v749 = vand.u32 %v748, 4294901760
    %750 = vmatpush1.msra.mxu0 %v749
    %751 = vmatprep.subr.mxu0 0.0
    %v752 = vand.u32 %v47, 4294901760
    %v753 = vsub.f32 %v47, %v752
    %v754 = vand.u32 %v753, 4294901760
    %755 = vmatpush1.msra.mxu0 %v754
    %756 = vmatprep.subr.mxu0 0.0
    %v757 = vand.u32 %v48, 4294901760
    %v758 = vsub.f32 %v48, %v757
    %v759 = vand.u32 %v758, 4294901760
    %760 = vmatpush1.msra.mxu0 %v759
    %761 = vmatprep.subr.mxu0 0.0
    %v762 = vand.u32 %v49, 4294901760
    %v763 = vsub.f32 %v49, %v762
    %v764 = vand.u32 %v763, 4294901760
    %765 = vmatpush1.msra.mxu0 %v764
    %766 = vmatprep.subr.mxu0 0.0
    %v767 = vand.u32 %v50, 4294901760
    %v768 = vsub.f32 %v50, %v767
    %v769 = vand.u32 %v768, 4294901760
    %770 = vmatpush1.msra.mxu0 %v769
    %771 = vmatprep.subr.mxu0 0.0
    %v772 = vand.u32 %v51, 4294901760
    %v773 = vsub.f32 %v51, %v772
    %v774 = vand.u32 %v773, 4294901760
    %775 = vmatpush1.msra.mxu0 %v774
    %776 = vmatprep.subr.mxu0 0.0
    %v777 = vand.u32 %v52, 4294901760
    %v778 = vsub.f32 %v52, %v777
    %v779 = vand.u32 %v778, 4294901760
    %780 = vmatpush1.msra.mxu0 %v779
    %781 = vmatprep.subr.mxu0 0.0
    %v782 = vand.u32 %v53, 4294901760
    %v783 = vsub.f32 %v53, %v782
    %v784 = vand.u32 %v783, 4294901760
    %785 = vmatpush1.msra.mxu0 %v784
    %786 = vmatprep.subr.mxu0 0.0
    %v787 = vand.u32 %v54, 4294901760
    %v788 = vsub.f32 %v54, %v787
    %v789 = vand.u32 %v788, 4294901760
    %790 = vmatpush1.msra.mxu0 %v789
    %791 = vmatprep.subr.mxu0 0.0
    %v792 = vand.u32 %v55, 4294901760
    %v793 = vsub.f32 %v55, %v792
    %v794 = vand.u32 %v793, 4294901760
    %795 = vmatpush1.msra.mxu0 %v794
    %796 = vmatprep.subr.mxu0 0.0
    %v797 = vand.u32 %v56, 4294901760
    %v798 = vsub.f32 %v56, %v797
    %v799 = vand.u32 %v798, 4294901760
    %800 = vmatpush1.msra.mxu0 %v799
    %801 = vmatprep.subr.mxu0 0.0
    %v802 = vand.u32 %v57, 4294901760
    %v803 = vsub.f32 %v57, %v802
    %v804 = vand.u32 %v803, 4294901760
    %805 = vmatpush1.msra.mxu0 %v804
    %806 = vmatprep.subr.mxu0 0.0
    %v807 = vand.u32 %v58, 4294901760
    %v808 = vsub.f32 %v58, %v807
    %v809 = vand.u32 %v808, 4294901760
    %810 = vmatpush1.msra.mxu0 %v809
    %811 = vmatprep.subr.mxu0 0.0
    %v812 = vand.u32 %v59, 4294901760
    %v813 = vsub.f32 %v59, %v812
    %v814 = vand.u32 %v813, 4294901760
    %815 = vmatpush1.msra.mxu0 %v814
    %816 = vmatprep.subr.mxu0 0.0
    %v817 = vand.u32 %v60, 4294901760
    %v818 = vsub.f32 %v60, %v817
    %v819 = vand.u32 %v818, 4294901760
    %820 = vmatpush1.msra.mxu0 %v819
    %821 = vmatprep.subr.mxu0 0.0
    %v822 = vand.u32 %v61, 4294901760
    %v823 = vsub.f32 %v61, %v822
    %v824 = vand.u32 %v823, 4294901760
    %825 = vmatpush1.msra.mxu0 %v824
    %826 = vmatprep.subr.mxu0 0.0
    %v827 = vand.u32 %v62, 4294901760
    %v828 = vsub.f32 %v62, %v827
    %v829 = vand.u32 %v828, 4294901760
    %830 = vmatpush1.msra.mxu0 %v829
    %v831 = vand.u32 %v78, 4294901760
    %832 = vmatprep.mubr.f32.mxu0 %v831
    %v833 = vand.u32 %v77, 4294901760
    %834 = vmatmul.mubr.f32.gmra.mrb[0].mxu0 %v833
    %v835 = vpop.f32.mrb[0].mxu0
    %v836 = vadd.f32 %v668, %v835
    %v837 = vpop.f32.mrb[0].mxu0
    %838 = vdwg.mxu0
    %839 = vmatprep.subr.mxu0 0.0
    %v840 = vand.u32 %v31, 4294901760
    %841 = vmatpush1.msra.mxu0 %v840
    %842 = vmatprep.subr.mxu0 0.0
    %v843 = vand.u32 %v32, 4294901760
    %844 = vmatpush1.msra.mxu0 %v843
    %845 = vmatprep.subr.mxu0 0.0
    %v846 = vand.u32 %v33, 4294901760
    %847 = vmatpush1.msra.mxu0 %v846
    %848 = vmatprep.subr.mxu0 0.0
    %v849 = vand.u32 %v34, 4294901760
    %850 = vmatpush1.msra.mxu0 %v849
    %851 = vmatprep.subr.mxu0 0.0
    %v852 = vand.u32 %v35, 4294901760
    %853 = vmatpush1.msra.mxu0 %v852
    %854 = vmatprep.subr.mxu0 0.0
    %v855 = vand.u32 %v36, 4294901760
    %856 = vmatpush1.msra.mxu0 %v855
    %857 = vmatprep.subr.mxu0 0.0
    %v858 = vand.u32 %v37, 4294901760
    %859 = vmatpush1.msra.mxu0 %v858
    %860 = vmatprep.subr.mxu0 0.0
    %v861 = vand.u32 %v38, 4294901760
    %862 = vmatpush1.msra.mxu0 %v861
    %863 = vmatprep.subr.mxu0 0.0
    %v864 = vand.u32 %v39, 4294901760
    %865 = vmatpush1.msra.mxu0 %v864
    %866 = vmatprep.subr.mxu0 0.0
    %v867 = vand.u32 %v40, 4294901760
    %868 = vmatpush1.msra.mxu0 %v867
    %869 = vmatprep.subr.mxu0 0.0
    %v870 = vand.u32 %v41, 4294901760
    %871 = vmatpush1.msra.mxu0 %v870
    %872 = vmatprep.subr.mxu0 0.0
    %v873 = vand.u32 %v42, 4294901760
    %874 = vmatpush1.msra.mxu0 %v873
    %875 = vmatprep.subr.mxu0 0.0
    %v876 = vand.u32 %v43, 4294901760
    %877 = vmatpush1.msra.mxu0 %v876
    %878 = vmatprep.subr.mxu0 0.0
    %v879 = vand.u32 %v44, 4294901760
    %880 = vmatpush1.msra.mxu0 %v879
    %881 = vmatprep.subr.mxu0 0.0
    %v882 = vand.u32 %v45, 4294901760
    %883 = vmatpush1.msra.mxu0 %v882
    %884 = vmatprep.subr.mxu0 0.0
    %v885 = vand.u32 %v46, 4294901760
    %886 = vmatpush1.msra.mxu0 %v885
    %887 = vmatprep.subr.mxu0 0.0
    %v888 = vand.u32 %v47, 4294901760
    %889 = vmatpush1.msra.mxu0 %v888
    %890 = vmatprep.subr.mxu0 0.0
    %v891 = vand.u32 %v48, 4294901760
    %892 = vmatpush1.msra.mxu0 %v891
    %893 = vmatprep.subr.mxu0 0.0
    %v894 = vand.u32 %v49, 4294901760
    %895 = vmatpush1.msra.mxu0 %v894
    %896 = vmatprep.subr.mxu0 0.0
    %v897 = vand.u32 %v50, 4294901760
    %898 = vmatpush1.msra.mxu0 %v897
    %899 = vmatprep.subr.mxu0 0.0
    %v900 = vand.u32 %v51, 4294901760
    %901 = vmatpush1.msra.mxu0 %v900
    %902 = vmatprep.subr.mxu0 0.0
    %v903 = vand.u32 %v52, 4294901760
    %904 = vmatpush1.msra.mxu0 %v903
    %905 = vmatprep.subr.mxu0 0.0
    %v906 = vand.u32 %v53, 4294901760
    %907 = vmatpush1.msra.mxu0 %v906
    %908 = vmatprep.subr.mxu0 0.0
    %v909 = vand.u32 %v54, 4294901760
    %910 = vmatpush1.msra.mxu0 %v909
    %911 = vmatprep.subr.mxu0 0.0
    %v912 = vand.u32 %v55, 4294901760
    %913 = vmatpush1.msra.mxu0 %v912
    %914 = vmatprep.subr.mxu0 0.0
    %v915 = vand.u32 %v56, 4294901760
    %916 = vmatpush1.msra.mxu0 %v915
    %917 = vmatprep.subr.mxu0 0.0
    %v918 = vand.u32 %v57, 4294901760
    %919 = vmatpush1.msra.mxu0 %v918
    %920 = vmatprep.subr.mxu0 0.0
    %v921 = vand.u32 %v58, 4294901760
    %922 = vmatpush1.msra.mxu0 %v921
    %923 = vmatprep.subr.mxu0 0.0
    %v924 = vand.u32 %v59, 4294901760
    %925 = vmatpush1.msra.mxu0 %v924
    %926 = vmatprep.subr.mxu0 0.0
    %v927 = vand.u32 %v60, 4294901760
    %928 = vmatpush1.msra.mxu0 %v927
    %929 = vmatprep.subr.mxu0 0.0
    %v930 = vand.u32 %v61, 4294901760
    %931 = vmatpush1.msra.mxu0 %v930
    %932 = vmatprep.subr.mxu0 0.0
    %v933 = vand.u32 %v62, 4294901760
    %934 = vmatpush1.msra.mxu0 %v933
    %v935 = vand.u32 %v78, 4294901760
    %936 = vmatprep.mubr.f32.mxu0 %v935
    %v937 = vand.u32 %v77, 4294901760
    %938 = vmatmul.mubr.f32.gmra.mrb[0].mxu0 %v937
    %v939 = vpop.f32.mrb[0].mxu0
    %v940 = vadd.f32 %v836, %v939
    %v941 = vpop.f32.mrb[0].mxu0
    %942 = vdwg.mxu0
    %v943 = vmax.f32 %v940, 0.0
    %v944 = vld [vmem:[%s3] sm:$0xff]
    %v945 = vld [vmem:[%s3 + $0x8] sm:$0xff]
    %v946 = vld [vmem:[%s3 + $0x10] sm:$0xff]
    %v947 = vld [vmem:[%s3 + $0x18] sm:$0xff]
    %v948 = vld [vmem:[%s3 + $0x20] sm:$0xff]
    %v949 = vld [vmem:[%s3 + $0x28] sm:$0xff]
    %v950 = vld [vmem:[%s3 + $0x30] sm:$0xff]
    %v951 = vld [vmem:[%s3 + $0x38] sm:$0xff]
    %v952 = vld [vmem:[%s4] sm:$0x1]
    %v954 = vlaneseq
    %v955 = vshrl.u32 %v954, 7
    %v956 = vsub.s32 0, %v955
    %v957 = vrot.slane %v952, %v956
    %vm959 = vcmask 523264
    %v961 = vsel %vm959, %v943, 0
    %963 = vmatprep.subr.mxu0 0.0
    %v964 = vand.u32 %v944, 4294901760
    %965 = vmatpush1.msra.mxu0 %v964
    %966 = vmatprep.subr.mxu0 0.0
    %v967 = vand.u32 %v945, 4294901760
    %968 = vmatpush1.msra.mxu0 %v967
    %969 = vmatprep.subr.mxu0 0.0
    %v970 = vand.u32 %v946, 4294901760
    %971 = vmatpush1.msra.mxu0 %v970
    %972 = vmatprep.subr.mxu0 0.0
    %v973 = vand.u32 %v947, 4294901760
    %974 = vmatpush1.msra.mxu0 %v973
    %975 = vmatprep.subr.mxu0 0.0
    %v976 = vand.u32 %v948, 4294901760
    %977 = vmatpush1.msra.mxu0 %v976
    %978 = vmatprep.subr.mxu0 0.0
    %v979 = vand.u32 %v949, 4294901760
    %980 = vmatpush1.msra.mxu0 %v979
    %981 = vmatprep.subr.mxu0 0.0
    %v982 = vand.u32 %v950, 4294901760
    %983 = vmatpush1.msra.mxu0 %v982
    %984 = vmatprep.subr.mxu0 0.0
    %v985 = vand.u32 %v951, 4294901760
    %986 = vmatpush1.msra.mxu0 %v985
    %987 = vmatprep.subr.mxu0 0.0
    %988 = vmatpush1.msra.mxu0 0.0
    %989 = vmatprep.subr.mxu0 0.0
    %990 = vmatpush1.msra.mxu0 0.0
    %991 = vmatprep.subr.mxu0 0.0
    %992 = vmatpush1.msra.mxu0 0.0
    %993 = vmatprep.subr.mxu0 0.0
    %994 = vmatpush1.msra.mxu0 0.0
    %995 = vmatprep.subr.mxu0 0.0
    %996 = vmatpush1.msra.mxu0 0.0
    %997 = vmatprep.subr.mxu0 0.0
    %998 = vmatpush1.msra.mxu0 0.0
    %999 = vmatprep.subr.mxu0 0.0
    %1000 = vmatpush1.msra.mxu0 0.0
    %1001 = vmatprep.subr.mxu0 0.0
    %1002 = vmatpush1.msra.mxu0 0.0
    %1003 = vmatprep.subr.mxu0 0.0
    %1004 = vmatpush1.msra.mxu0 0.0
    %1005 = vmatprep.subr.mxu0 0.0
    %1006 = vmatpush1.msra.mxu0 0.0
    %1007 = vmatprep.subr.mxu0 0.0
    %1008 = vmatpush1.msra.mxu0 0.0
    %1009 = vmatprep.subr.mxu0 0.0
    %1010 = vmatpush1.msra.mxu0 0.0
    %1011 = vmatprep.subr.mxu0 0.0
    %1012 = vmatpush1.msra.mxu0 0.0
    %1013 = vmatprep.subr.mxu0 0.0
    %1014 = vmatpush1.msra.mxu0 0.0
    %1015 = vmatprep.subr.mxu0 0.0
    %1016 = vmatpush1.msra.mxu0 0.0
    %1017 = vmatprep.subr.mxu0 0.0
    %1018 = vmatpush1.msra.mxu0 0.0
    %1019 = vmatprep.subr.mxu0 0.0
    %1020 = vmatpush1.msra.mxu0 0.0
    %1021 = vmatprep.subr.mxu0 0.0
    %1022 = vmatpush1.msra.mxu0 0.0
    %1023 = vmatprep.subr.mxu0 0.0
    %1024 = vmatpush1.msra.mxu0 0.0
    %1025 = vmatprep.subr.mxu0 0.0
    %1026 = vmatpush1.msra.mxu0 0.0
    %1027 = vmatprep.subr.mxu0 0.0
    %1028 = vmatpush1.msra.mxu0 0.0
    %1029 = vmatprep.subr.mxu0 0.0
    %1030 = vmatpush1.msra.mxu0 0.0
    %1031 = vmatprep.subr.mxu0 0.0
    %1032 = vmatpush1.msra.mxu0 0.0
    %1033 = vmatprep.subr.mxu0 0.0
    %1034 = vmatpush1.msra.mxu0 0.0
    %1035 = vmatprep.mubr.f32.mxu0 0.0
    %v1036 = vand.u32 %v961, 4294901760
    %v1037 = vsub.f32 %v961, %v1036
    %v1038 = vand.u32 %v1037, 4294901760
    %v1039 = vsub.f32 %v1037, %v1038
    %v1040 = vand.u32 %v1039, 4294901760
    %1041 = vmatmul.mubr.f32.gmra.mrb[0].mxu0 %v1040
    %v1042 = vpop.f32.mrb[0].mxu0
    %v1043 = vadd.f32 %v957, %v1042
    %v1044 = vpop.f32.mrb[0].mxu0
    %1045 = vdwg.mxu0
    %1046 = vmatprep.subr.mxu0 0.0
    %v1047 = vand.u32 %v944, 4294901760
    %v1048 = vsub.f32 %v944, %v1047
    %v1049 = vand.u32 %v1048, 4294901760
    %v1050 = vsub.f32 %v1048, %v1049
    %v1051 = vand.u32 %v1050, 4294901760
    %1052 = vmatpush1.msra.mxu0 %v1051
    %1053 = vmatprep.subr.mxu0 0.0
    %v1054 = vand.u32 %v945, 4294901760
    %v1055 = vsub.f32 %v945, %v1054
    %v1056 = vand.u32 %v1055, 4294901760
    %v1057 = vsub.f32 %v1055, %v1056
    %v1058 = vand.u32 %v1057, 4294901760
    %1059 = vmatpush1.msra.mxu0 %v1058
    %1060 = vmatprep.subr.mxu0 0.0
    %v1061 = vand.u32 %v946, 4294901760
    %v1062 = vsub.f32 %v946, %v1061
    %v1063 = vand.u32 %v1062, 4294901760
    %v1064 = vsub.f32 %v1062, %v1063
    %v1065 = vand.u32 %v1064, 4294901760
    %1066 = vmatpush1.msra.mxu0 %v1065
    %1067 = vmatprep.subr.mxu0 0.0
    %v1068 = vand.u32 %v947, 4294901760
    %v1069 = vsub.f32 %v947, %v1068
    %v1070 = vand.u32 %v1069, 4294901760
    %v1071 = vsub.f32 %v1069, %v1070
    %v1072 = vand.u32 %v1071, 4294901760
    %1073 = vmatpush1.msra.mxu0 %v1072
    %1074 = vmatprep.subr.mxu0 0.0
    %v1075 = vand.u32 %v948, 4294901760
    %v1076 = vsub.f32 %v948, %v1075
    %v1077 = vand.u32 %v1076, 4294901760
    %v1078 = vsub.f32 %v1076, %v1077
    %v1079 = vand.u32 %v1078, 4294901760
    %1080 = vmatpush1.msra.mxu0 %v1079
    %1081 = vmatprep.subr.mxu0 0.0
    %v1082 = vand.u32 %v949, 4294901760
    %v1083 = vsub.f32 %v949, %v1082
    %v1084 = vand.u32 %v1083, 4294901760
    %v1085 = vsub.f32 %v1083, %v1084
    %v1086 = vand.u32 %v1085, 4294901760
    %1087 = vmatpush1.msra.mxu0 %v1086
    %1088 = vmatprep.subr.mxu0 0.0
    %v1089 = vand.u32 %v950, 4294901760
    %v1090 = vsub.f32 %v950, %v1089
    %v1091 = vand.u32 %v1090, 4294901760
    %v1092 = vsub.f32 %v1090, %v1091
    %v1093 = vand.u32 %v1092, 4294901760
    %1094 = vmatpush1.msra.mxu0 %v1093
    %1095 = vmatprep.subr.mxu0 0.0
    %v1096 = vand.u32 %v951, 4294901760
    %v1097 = vsub.f32 %v951, %v1096
    %v1098 = vand.u32 %v1097, 4294901760
    %v1099 = vsub.f32 %v1097, %v1098
    %v1100 = vand.u32 %v1099, 4294901760
    %1101 = vmatpush1.msra.mxu0 %v1100
    %1102 = vmatprep.subr.mxu0 0.0
    %1103 = vmatpush1.msra.mxu0 0.0
    %1104 = vmatprep.subr.mxu0 0.0
    %1105 = vmatpush1.msra.mxu0 0.0
    %1106 = vmatprep.subr.mxu0 0.0
    %1107 = vmatpush1.msra.mxu0 0.0
    %1108 = vmatprep.subr.mxu0 0.0
    %1109 = vmatpush1.msra.mxu0 0.0
    %1110 = vmatprep.subr.mxu0 0.0
    %1111 = vmatpush1.msra.mxu0 0.0
    %1112 = vmatprep.subr.mxu0 0.0
    %1113 = vmatpush1.msra.mxu0 0.0
    %1114 = vmatprep.subr.mxu0 0.0
    %1115 = vmatpush1.msra.mxu0 0.0
    %1116 = vmatprep.subr.mxu0 0.0
    %1117 = vmatpush1.msra.mxu0 0.0
    %1118 = vmatprep.subr.mxu0 0.0
    %1119 = vmatpush1.msra.mxu0 0.0
    %1120 = vmatprep.subr.mxu0 0.0
    %1121 = vmatpush1.msra.mxu0 0.0
    %1122 = vmatprep.subr.mxu0 0.0
    %1123 = vmatpush1.msra.mxu0 0.0
    %1124 = vmatprep.subr.mxu0 0.0
    %1125 = vmatpush1.msra.mxu0 0.0
    %1126 = vmatprep.subr.mxu0 0.0
    %1127 = vmatpush1.msra.mxu0 0.0
    %1128 = vmatprep.subr.mxu0 0.0
    %1129 = vmatpush1.msra.mxu0 0.0
    %1130 = vmatprep.subr.mxu0 0.0
    %1131 = vmatpush1.msra.mxu0 0.0
    %1132 = vmatprep.subr.mxu0 0.0
    %1133 = vmatpush1.msra.mxu0 0.0
    %1134 = vmatprep.subr.mxu0 0.0
    %1135 = vmatpush1.msra.mxu0 0.0
    %1136 = vmatprep.subr.mxu0 0.0
    %1137 = vmatpush1.msra.mxu0 0.0
    %1138 = vmatprep.subr.mxu0 0.0
    %1139 = vmatpush1.msra.mxu0 0.0
    %1140 = vmatprep.subr.mxu0 0.0
    %1141 = vmatpush1.msra.mxu0 0.0
    %1142 = vmatprep.subr.mxu0 0.0
    %1143 = vmatpush1.msra.mxu0 0.0
    %1144 = vmatprep.subr.mxu0 0.0
    %1145 = vmatpush1.msra.mxu0 0.0
    %1146 = vmatprep.subr.mxu0 0.0
    %1147 = vmatpush1.msra.mxu0 0.0
    %1148 = vmatprep.subr.mxu0 0.0
    %1149 = vmatpush1.msra.mxu0 0.0
    %1150 = vmatprep.mubr.f32.mxu0 0.0
    %v1151 = vand.u32 %v961, 4294901760
    %1152 = vmatmul.mubr.f32.gmra.mrb[0].mxu0 %v1151
    %v1153 = vpop.f32.mrb[0].mxu0
    %v1154 = vadd.f32 %v1043, %v1153
    %v1155 = vpop.f32.mrb[0].mxu0
    %1156 = vdwg.mxu0
    %1157 = vmatprep.subr.mxu0 0.0
    %v1158 = vand.u32 %v944, 4294901760
    %v1159 = vsub.f32 %v944, %v1158
    %1160 = vmatpush1.msra.mxu0 %v1159
    %1161 = vmatprep.subr.mxu0 0.0
    %v1162 = vand.u32 %v945, 4294901760
    %v1163 = vsub.f32 %v945, %v1162
    %1164 = vmatpush1.msra.mxu0 %v1163
    %1165 = vmatprep.subr.mxu0 0.0
    %v1166 = vand.u32 %v946, 4294901760
    %v1167 = vsub.f32 %v946, %v1166
    %1168 = vmatpush1.msra.mxu0 %v1167
    %1169 = vmatprep.subr.mxu0 0.0
    %v1170 = vand.u32 %v947, 4294901760
    %v1171 = vsub.f32 %v947, %v1170
    %1172 = vmatpush1.msra.mxu0 %v1171
    %1173 = vmatprep.subr.mxu0 0.0
    %v1174 = vand.u32 %v948, 4294901760
    %v1175 = vsub.f32 %v948, %v1174
    %1176 = vmatpush1.msra.mxu0 %v1175
    %1177 = vmatprep.subr.mxu0 0.0
    %v1178 = vand.u32 %v949, 4294901760
    %v1179 = vsub.f32 %v949, %v1178
    %1180 = vmatpush1.msra.mxu0 %v1179
    %1181 = vmatprep.subr.mxu0 0.0
    %v1182 = vand.u32 %v950, 4294901760
    %v1183 = vsub.f32 %v950, %v1182
    %1184 = vmatpush1.msra.mxu0 %v1183
    %1185 = vmatprep.subr.mxu0 0.0
    %v1186 = vand.u32 %v951, 4294901760
    %v1187 = vsub.f32 %v951, %v1186
    %1188 = vmatpush1.msra.mxu0 %v1187
    %1189 = vmatprep.subr.mxu0 0.0
    %1190 = vmatpush1.msra.mxu0 0.0
    %1191 = vmatprep.subr.mxu0 0.0
    %1192 = vmatpush1.msra.mxu0 0.0
    %1193 = vmatprep.subr.mxu0 0.0
    %1194 = vmatpush1.msra.mxu0 0.0
    %1195 = vmatprep.subr.mxu0 0.0
    %1196 = vmatpush1.msra.mxu0 0.0
    %1197 = vmatprep.subr.mxu0 0.0
    %1198 = vmatpush1.msra.mxu0 0.0
    %1199 = vmatprep.subr.mxu0 0.0
    %1200 = vmatpush1.msra.mxu0 0.0
    %1201 = vmatprep.subr.mxu0 0.0
    %1202 = vmatpush1.msra.mxu0 0.0
    %1203 = vmatprep.subr.mxu0 0.0
    %1204 = vmatpush1.msra.mxu0 0.0
    %1205 = vmatprep.subr.mxu0 0.0
    %1206 = vmatpush1.msra.mxu0 0.0
    %1207 = vmatprep.subr.mxu0 0.0
    %1208 = vmatpush1.msra.mxu0 0.0
    %1209 = vmatprep.subr.mxu0 0.0
    %1210 = vmatpush1.msra.mxu0 0.0
    %1211 = vmatprep.subr.mxu0 0.0
    %1212 = vmatpush1.msra.mxu0 0.0
    %1213 = vmatprep.subr.mxu0 0.0
    %1214 = vmatpush1.msra.mxu0 0.0
    %1215 = vmatprep.subr.mxu0 0.0
    %1216 = vmatpush1.msra.mxu0 0.0
    %1217 = vmatprep.subr.mxu0 0.0
    %1218 = vmatpush1.msra.mxu0 0.0
    %1219 = vmatprep.subr.mxu0 0.0
    %1220 = vmatpush1.msra.mxu0 0.0
    %1221 = vmatprep.subr.mxu0 0.0
    %1222 = vmatpush1.msra.mxu0 0.0
    %1223 = vmatprep.subr.mxu0 0.0
    %1224 = vmatpush1.msra.mxu0 0.0
    %1225 = vmatprep.subr.mxu0 0.0
    %1226 = vmatpush1.msra.mxu0 0.0
    %1227 = vmatprep.subr.mxu0 0.0
    %1228 = vmatpush1.msra.mxu0 0.0
    %1229 = vmatprep.subr.mxu0 0.0
    %1230 = vmatpush1.msra.mxu0 0.0
    %1231 = vmatprep.subr.mxu0 0.0
    %1232 = vmatpush1.msra.mxu0 0.0
    %1233 = vmatprep.subr.mxu0 0.0
    %1234 = vmatpush1.msra.mxu0 0.0
    %1235 = vmatprep.subr.mxu0 0.0
    %1236 = vmatpush1.msra.mxu0 0.0
    %1237 = vmatprep.mubr.f32.mxu0 0.0
    %v1238 = vand.u32 %v961, 4294901760
    %v1239 = vsub.f32 %v961, %v1238
    %1240 = vmatmul.mubr.f32.gmra.mrb[0].mxu0 %v1239
    %v1241 = vpop.f32.mrb[0].mxu0
    %v1242 = vadd.f32 %v1154, %v1241
    %v1243 = vpop.f32.mrb[0].mxu0
    %1244 = vdwg.mxu0
    %1245 = vmatprep.subr.mxu0 0.0
    %v1246 = vand.u32 %v944, 4294901760
    %1247 = vmatpush1.msra.mxu0 %v1246
    %1248 = vmatprep.subr.mxu0 0.0
    %v1249 = vand.u32 %v945, 4294901760
    %1250 = vmatpush1.msra.mxu0 %v1249
    %1251 = vmatprep.subr.mxu0 0.0
    %v1252 = vand.u32 %v946, 4294901760
    %1253 = vmatpush1.msra.mxu0 %v1252
    %1254 = vmatprep.subr.mxu0 0.0
    %v1255 = vand.u32 %v947, 4294901760
    %1256 = vmatpush1.msra.mxu0 %v1255
    %1257 = vmatprep.subr.mxu0 0.0
    %v1258 = vand.u32 %v948, 4294901760
    %1259 = vmatpush1.msra.mxu0 %v1258
    %1260 = vmatprep.subr.mxu0 0.0
    %v1261 = vand.u32 %v949, 4294901760
    %1262 = vmatpush1.msra.mxu0 %v1261
    %1263 = vmatprep.subr.mxu0 0.0
    %v1264 = vand.u32 %v950, 4294901760
    %1265 = vmatpush1.msra.mxu0 %v1264
    %1266 = vmatprep.subr.mxu0 0.0
    %v1267 = vand.u32 %v951, 4294901760
    %1268 = vmatpush1.msra.mxu0 %v1267
    %1269 = vmatprep.subr.mxu0 0.0
    %1270 = vmatpush1.msra.mxu0 0.0
    %1271 = vmatprep.subr.mxu0 0.0
    %1272 = vmatpush1.msra.mxu0 0.0
    %1273 = vmatprep.subr.mxu0 0.0
    %1274 = vmatpush1.msra.mxu0 0.0
    %1275 = vmatprep.subr.mxu0 0.0
    %1276 = vmatpush1.msra.mxu0 0.0
    %1277 = vmatprep.subr.mxu0 0.0
    %1278 = vmatpush1.msra.mxu0 0.0
    %1279 = vmatprep.subr.mxu0 0.0
    %1280 = vmatpush1.msra.mxu0 0.0
    %1281 = vmatprep.subr.mxu0 0.0
    %1282 = vmatpush1.msra.mxu0 0.0
    %1283 = vmatprep.subr.mxu0 0.0
    %1284 = vmatpush1.msra.mxu0 0.0
    %1285 = vmatprep.subr.mxu0 0.0
    %1286 = vmatpush1.msra.mxu0 0.0
    %1287 = vmatprep.subr.mxu0 0.0
    %1288 = vmatpush1.msra.mxu0 0.0
    %1289 = vmatprep.subr.mxu0 0.0
    %1290 = vmatpush1.msra.mxu0 0.0
    %1291 = vmatprep.subr.mxu0 0.0
    %1292 = vmatpush1.msra.mxu0 0.0
    %1293 = vmatprep.subr.mxu0 0.0
    %1294 = vmatpush1.msra.mxu0 0.0
    %1295 = vmatprep.subr.mxu0 0.0
    %1296 = vmatpush1.msra.mxu0 0.0
    %1297 = vmatprep.subr.mxu0 0.0
    %1298 = vmatpush1.msra.mxu0 0.0
    %1299 = vmatprep.subr.mxu0 0.0
    %1300 = vmatpush1.msra.mxu0 0.0
    %1301 = vmatprep.subr.mxu0 0.0
    %1302 = vmatpush1.msra.mxu0 0.0
    %1303 = vmatprep.subr.mxu0 0.0
    %1304 = vmatpush1.msra.mxu0 0.0
    %1305 = vmatprep.subr.mxu0 0.0
    %1306 = vmatpush1.msra.mxu0 0.0
    %1307 = vmatprep.subr.mxu0 0.0
    %1308 = vmatpush1.msra.mxu0 0.0
    %1309 = vmatprep.subr.mxu0 0.0
    %1310 = vmatpush1.msra.mxu0 0.0
    %1311 = vmatprep.subr.mxu0 0.0
    %1312 = vmatpush1.msra.mxu0 0.0
    %1313 = vmatprep.subr.mxu0 0.0
    %1314 = vmatpush1.msra.mxu0 0.0
    %1315 = vmatprep.subr.mxu0 0.0
    %1316 = vmatpush1.msra.mxu0 0.0
    %1317 = vmatprep.mubr.f32.mxu0 0.0
    %v1318 = vand.u32 %v961, 4294901760
    %v1319 = vsub.f32 %v961, %v1318
    %v1320 = vand.u32 %v1319, 4294901760
    %1321 = vmatmul.mubr.f32.gmra.mrb[0].mxu0 %v1320
    %v1322 = vpop.f32.mrb[0].mxu0
    %v1323 = vadd.f32 %v1242, %v1322
    %v1324 = vpop.f32.mrb[0].mxu0
    %1325 = vdwg.mxu0
    %1326 = vmatprep.subr.mxu0 0.0
    %v1327 = vand.u32 %v944, 4294901760
    %v1328 = vsub.f32 %v944, %v1327
    %v1329 = vand.u32 %v1328, 4294901760
    %1330 = vmatpush1.msra.mxu0 %v1329
    %1331 = vmatprep.subr.mxu0 0.0
    %v1332 = vand.u32 %v945, 4294901760
    %v1333 = vsub.f32 %v945, %v1332
    %v1334 = vand.u32 %v1333, 4294901760
    %1335 = vmatpush1.msra.mxu0 %v1334
    %1336 = vmatprep.subr.mxu0 0.0
    %v1337 = vand.u32 %v946, 4294901760
    %v1338 = vsub.f32 %v946, %v1337
    %v1339 = vand.u32 %v1338, 4294901760
    %1340 = vmatpush1.msra.mxu0 %v1339
    %1341 = vmatprep.subr.mxu0 0.0
    %v1342 = vand.u32 %v947, 4294901760
    %v1343 = vsub.f32 %v947, %v1342
    %v1344 = vand.u32 %v1343, 4294901760
    %1345 = vmatpush1.msra.mxu0 %v1344
    %1346 = vmatprep.subr.mxu0 0.0
    %v1347 = vand.u32 %v948, 4294901760
    %v1348 = vsub.f32 %v948, %v1347
    %v1349 = vand.u32 %v1348, 4294901760
    %1350 = vmatpush1.msra.mxu0 %v1349
    %1351 = vmatprep.subr.mxu0 0.0
    %v1352 = vand.u32 %v949, 4294901760
    %v1353 = vsub.f32 %v949, %v1352
    %v1354 = vand.u32 %v1353, 4294901760
    %1355 = vmatpush1.msra.mxu0 %v1354
    %1356 = vmatprep.subr.mxu0 0.0
    %v1357 = vand.u32 %v950, 4294901760
    %v1358 = vsub.f32 %v950, %v1357
    %v1359 = vand.u32 %v1358, 4294901760
    %1360 = vmatpush1.msra.mxu0 %v1359
    %1361 = vmatprep.subr.mxu0 0.0
    %v1362 = vand.u32 %v951, 4294901760
    %v1363 = vsub.f32 %v951, %v1362
    %v1364 = vand.u32 %v1363, 4294901760
    %1365 = vmatpush1.msra.mxu0 %v1364
    %1366 = vmatprep.subr.mxu0 0.0
    %1367 = vmatpush1.msra.mxu0 0.0
    %1368 = vmatprep.subr.mxu0 0.0
    %1369 = vmatpush1.msra.mxu0 0.0
    %1370 = vmatprep.subr.mxu0 0.0
    %1371 = vmatpush1.msra.mxu0 0.0
    %1372 = vmatprep.subr.mxu0 0.0
    %1373 = vmatpush1.msra.mxu0 0.0
    %1374 = vmatprep.subr.mxu0 0.0
    %1375 = vmatpush1.msra.mxu0 0.0
    %1376 = vmatprep.subr.mxu0 0.0
    %1377 = vmatpush1.msra.mxu0 0.0
    %1378 = vmatprep.subr.mxu0 0.0
    %1379 = vmatpush1.msra.mxu0 0.0
    %1380 = vmatprep.subr.mxu0 0.0
    %1381 = vmatpush1.msra.mxu0 0.0
    %1382 = vmatprep.subr.mxu0 0.0
    %1383 = vmatpush1.msra.mxu0 0.0
    %1384 = vmatprep.subr.mxu0 0.0
    %1385 = vmatpush1.msra.mxu0 0.0
    %1386 = vmatprep.subr.mxu0 0.0
    %1387 = vmatpush1.msra.mxu0 0.0
    %1388 = vmatprep.subr.mxu0 0.0
    %1389 = vmatpush1.msra.mxu0 0.0
    %1390 = vmatprep.subr.mxu0 0.0
    %1391 = vmatpush1.msra.mxu0 0.0
    %1392 = vmatprep.subr.mxu0 0.0
    %1393 = vmatpush1.msra.mxu0 0.0
    %1394 = vmatprep.subr.mxu0 0.0
    %1395 = vmatpush1.msra.mxu0 0.0
    %1396 = vmatprep.subr.mxu0 0.0
    %1397 = vmatpush1.msra.mxu0 0.0
    %1398 = vmatprep.subr.mxu0 0.0
    %1399 = vmatpush1.msra.mxu0 0.0
    %1400 = vmatprep.subr.mxu0 0.0
    %1401 = vmatpush1.msra.mxu0 0.0
    %1402 = vmatprep.subr.mxu0 0.0
    %1403 = vmatpush1.msra.mxu0 0.0
    %1404 = vmatprep.subr.mxu0 0.0
    %1405 = vmatpush1.msra.mxu0 0.0
    %1406 = vmatprep.subr.mxu0 0.0
    %1407 = vmatpush1.msra.mxu0 0.0
    %1408 = vmatprep.subr.mxu0 0.0
    %1409 = vmatpush1.msra.mxu0 0.0
    %1410 = vmatprep.subr.mxu0 0.0
    %1411 = vmatpush1.msra.mxu0 0.0
    %1412 = vmatprep.subr.mxu0 0.0
    %1413 = vmatpush1.msra.mxu0 0.0
    %1414 = vmatprep.mubr.f32.mxu0 0.0
    %v1415 = vand.u32 %v961, 4294901760
    %1416 = vmatmul.mubr.f32.gmra.mrb[0].mxu0 %v1415
    %v1417 = vpop.f32.mrb[0].mxu0
    %v1418 = vadd.f32 %v1323, %v1417
    %v1419 = vpop.f32.mrb[0].mxu0
    %1420 = vdwg.mxu0
    %1421 = vmatprep.subr.mxu0 0.0
    %v1422 = vand.u32 %v944, 4294901760
    %1423 = vmatpush1.msra.mxu0 %v1422
    %1424 = vmatprep.subr.mxu0 0.0
    %v1425 = vand.u32 %v945, 4294901760
    %1426 = vmatpush1.msra.mxu0 %v1425
    %1427 = vmatprep.subr.mxu0 0.0
    %v1428 = vand.u32 %v946, 4294901760
    %1429 = vmatpush1.msra.mxu0 %v1428
    %1430 = vmatprep.subr.mxu0 0.0
    %v1431 = vand.u32 %v947, 4294901760
    %1432 = vmatpush1.msra.mxu0 %v1431
    %1433 = vmatprep.subr.mxu0 0.0
    %v1434 = vand.u32 %v948, 4294901760
    %1435 = vmatpush1.msra.mxu0 %v1434
    %1436 = vmatprep.subr.mxu0 0.0
    %v1437 = vand.u32 %v949, 4294901760
    %1438 = vmatpush1.msra.mxu0 %v1437
    %1439 = vmatprep.subr.mxu0 0.0
    %v1440 = vand.u32 %v950, 4294901760
    %1441 = vmatpush1.msra.mxu0 %v1440
    %1442 = vmatprep.subr.mxu0 0.0
    %v1443 = vand.u32 %v951, 4294901760
    %1444 = vmatpush1.msra.mxu0 %v1443
    %1445 = vmatprep.subr.mxu0 0.0
    %1446 = vmatpush1.msra.mxu0 0.0
    %1447 = vmatprep.subr.mxu0 0.0
    %1448 = vmatpush1.msra.mxu0 0.0
    %1449 = vmatprep.subr.mxu0 0.0
    %1450 = vmatpush1.msra.mxu0 0.0
    %1451 = vmatprep.subr.mxu0 0.0
    %1452 = vmatpush1.msra.mxu0 0.0
    %1453 = vmatprep.subr.mxu0 0.0
    %1454 = vmatpush1.msra.mxu0 0.0
    %1455 = vmatprep.subr.mxu0 0.0
    %1456 = vmatpush1.msra.mxu0 0.0
    %1457 = vmatprep.subr.mxu0 0.0
    %1458 = vmatpush1.msra.mxu0 0.0
    %1459 = vmatprep.subr.mxu0 0.0
    %1460 = vmatpush1.msra.mxu0 0.0
    %1461 = vmatprep.subr.mxu0 0.0
    %1462 = vmatpush1.msra.mxu0 0.0
    %1463 = vmatprep.subr.mxu0 0.0
    %1464 = vmatpush1.msra.mxu0 0.0
    %1465 = vmatprep.subr.mxu0 0.0
    %1466 = vmatpush1.msra.mxu0 0.0
    %1467 = vmatprep.subr.mxu0 0.0
    %1468 = vmatpush1.msra.mxu0 0.0
    %1469 = vmatprep.subr.mxu0 0.0
    %1470 = vmatpush1.msra.mxu0 0.0
    %1471 = vmatprep.subr.mxu0 0.0
    %1472 = vmatpush1.msra.mxu0 0.0
    %1473 = vmatprep.subr.mxu0 0.0
    %1474 = vmatpush1.msra.mxu0 0.0
    %1475 = vmatprep.subr.mxu0 0.0
    %1476 = vmatpush1.msra.mxu0 0.0
    %1477 = vmatprep.subr.mxu0 0.0
    %1478 = vmatpush1.msra.mxu0 0.0
    %1479 = vmatprep.subr.mxu0 0.0
    %1480 = vmatpush1.msra.mxu0 0.0
    %1481 = vmatprep.subr.mxu0 0.0
    %1482 = vmatpush1.msra.mxu0 0.0
    %1483 = vmatprep.subr.mxu0 0.0
    %1484 = vmatpush1.msra.mxu0 0.0
    %1485 = vmatprep.subr.mxu0 0.0
    %1486 = vmatpush1.msra.mxu0 0.0
    %1487 = vmatprep.subr.mxu0 0.0
    %1488 = vmatpush1.msra.mxu0 0.0
    %1489 = vmatprep.subr.mxu0 0.0
    %1490 = vmatpush1.msra.mxu0 0.0
    %1491 = vmatprep.subr.mxu0 0.0
    %1492 = vmatpush1.msra.mxu0 0.0
    %1493 = vmatprep.mubr.f32.mxu0 0.0
    %v1494 = vand.u32 %v961, 4294901760
    %1495 = vmatmul.mubr.f32.gmra.mrb[0].mxu0 %v1494
    %v1496 = vpop.f32.mrb[0].mxu0
    %v1497 = vadd.f32 %v1418, %v1496
    %v1498 = vpop.f32.mrb[0].mxu0
    %1499 = vdwg.mxu0
    %v1500 = vmax.f32 %v1497, 0.0
    %v1501 = vld [vmem:[%s5] sm:$0xff]
    %v1502 = vld [vmem:[%s5 + $0x8] sm:$0xff]
    %v1503 = vld [vmem:[%s5 + $0x10] sm:$0xff]
    %v1504 = vld [vmem:[%s5 + $0x18] sm:$0xff]
    %v1505 = vld [vmem:[%s6] sm:$0x1]
    %v1507 = vlaneseq
    %v1508 = vshrl.u32 %v1507, 7
    %v1509 = vsub.s32 0, %v1508
    %v1510 = vrot.slane %v1505, %v1509
    %vm1512 = vcmask 261120
    %v1514 = vsel %vm1512, %v1500, 0
    %1516 = vmatprep.subr.mxu0 0.0
    %v1517 = vand.u32 %v1501, 4294901760
    %1518 = vmatpush1.msra.mxu0 %v1517
    %1519 = vmatprep.subr.mxu0 0.0
    %v1520 = vand.u32 %v1502, 4294901760
    %1521 = vmatpush1.msra.mxu0 %v1520
    %1522 = vmatprep.subr.mxu0 0.0
    %v1523 = vand.u32 %v1503, 4294901760
    %1524 = vmatpush1.msra.mxu0 %v1523
    %1525 = vmatprep.subr.mxu0 0.0
    %v1526 = vand.u32 %v1504, 4294901760
    %1527 = vmatpush1.msra.mxu0 %v1526
    %1528 = vmatprep.subr.mxu0 0.0
    %1529 = vmatpush1.msra.mxu0 0.0
    %1530 = vmatprep.subr.mxu0 0.0
    %1531 = vmatpush1.msra.mxu0 0.0
    %1532 = vmatprep.subr.mxu0 0.0
    %1533 = vmatpush1.msra.mxu0 0.0
    %1534 = vmatprep.subr.mxu0 0.0
    %1535 = vmatpush1.msra.mxu0 0.0
    %1536 = vmatprep.subr.mxu0 0.0
    %1537 = vmatpush1.msra.mxu0 0.0
    %1538 = vmatprep.subr.mxu0 0.0
    %1539 = vmatpush1.msra.mxu0 0.0
    %1540 = vmatprep.subr.mxu0 0.0
    %1541 = vmatpush1.msra.mxu0 0.0
    %1542 = vmatprep.subr.mxu0 0.0
    %1543 = vmatpush1.msra.mxu0 0.0
    %1544 = vmatprep.subr.mxu0 0.0
    %1545 = vmatpush1.msra.mxu0 0.0
    %1546 = vmatprep.subr.mxu0 0.0
    %1547 = vmatpush1.msra.mxu0 0.0
    %1548 = vmatprep.subr.mxu0 0.0
    %1549 = vmatpush1.msra.mxu0 0.0
    %1550 = vmatprep.subr.mxu0 0.0
    %1551 = vmatpush1.msra.mxu0 0.0
    %1552 = vmatprep.subr.mxu0 0.0
    %1553 = vmatpush1.msra.mxu0 0.0
    %1554 = vmatprep.subr.mxu0 0.0
    %1555 = vmatpush1.msra.mxu0 0.0
    %1556 = vmatprep.subr.mxu0 0.0
    %1557 = vmatpush1.msra.mxu0 0.0
    %1558 = vmatprep.subr.mxu0 0.0
    %1559 = vmatpush1.msra.mxu0 0.0
    %1560 = vmatprep.subr.mxu0 0.0
    %1561 = vmatpush1.msra.mxu0 0.0
    %1562 = vmatprep.subr.mxu0 0.0
    %1563 = vmatpush1.msra.mxu0 0.0
    %1564 = vmatprep.subr.mxu0 0.0
    %1565 = vmatpush1.msra.mxu0 0.0
    %1566 = vmatprep.subr.mxu0 0.0
    %1567 = vmatpush1.msra.mxu0 0.0
    %1568 = vmatprep.subr.mxu0 0.0
    %1569 = vmatpush1.msra.mxu0 0.0
    %1570 = vmatprep.subr.mxu0 0.0
    %1571 = vmatpush1.msra.mxu0 0.0
    %1572 = vmatprep.subr.mxu0 0.0
    %1573 = vmatpush1.msra.mxu0 0.0
    %1574 = vmatprep.subr.mxu0 0.0
    %1575 = vmatpush1.msra.mxu0 0.0
    %1576 = vmatprep.subr.mxu0 0.0
    %1577 = vmatpush1.msra.mxu0 0.0
    %1578 = vmatprep.subr.mxu0 0.0
    %1579 = vmatpush1.msra.mxu0 0.0
    %1580 = vmatprep.subr.mxu0 0.0
    %1581 = vmatpush1.msra.mxu0 0.0
    %1582 = vmatprep.subr.mxu0 0.0
    %1583 = vmatpush1.msra.mxu0 0.0
    %1584 = vmatprep.mubr.f32.mxu0 0.0
    %v1585 = vand.u32 %v1514, 4294901760
    %v1586 = vsub.f32 %v1514, %v1585
    %v1587 = vand.u32 %v1586, 4294901760
    %v1588 = vsub.f32 %v1586, %v1587
    %v1589 = vand.u32 %v1588, 4294901760
    %1590 = vmatmul.mubr.f32.gmra.mrb[0].mxu0 %v1589
    %v1591 = vpop.f32.mrb[0].mxu0
    %v1592 = vadd.f32 %v1510, %v1591
    %v1593 = vpop.f32.mrb[0].mxu0
    %1594 = vdwg.mxu0
    %1595 = vmatprep.subr.mxu0 0.0
    %v1596 = vand.u32 %v1501, 4294901760
    %v1597 = vsub.f32 %v1501, %v1596
    %v1598 = vand.u32 %v1597, 4294901760
    %v1599 = vsub.f32 %v1597, %v1598
    %v1600 = vand.u32 %v1599, 4294901760
    %1601 = vmatpush1.msra.mxu0 %v1600
    %1602 = vmatprep.subr.mxu0 0.0
    %v1603 = vand.u32 %v1502, 4294901760
    %v1604 = vsub.f32 %v1502, %v1603
    %v1605 = vand.u32 %v1604, 4294901760
    %v1606 = vsub.f32 %v1604, %v1605
    %v1607 = vand.u32 %v1606, 4294901760
    %1608 = vmatpush1.msra.mxu0 %v1607
    %1609 = vmatprep.subr.mxu0 0.0
    %v1610 = vand.u32 %v1503, 4294901760
    %v1611 = vsub.f32 %v1503, %v1610
    %v1612 = vand.u32 %v1611, 4294901760
    %v1613 = vsub.f32 %v1611, %v1612
    %v1614 = vand.u32 %v1613, 4294901760
    %1615 = vmatpush1.msra.mxu0 %v1614
    %1616 = vmatprep.subr.mxu0 0.0
    %v1617 = vand.u32 %v1504, 4294901760
    %v1618 = vsub.f32 %v1504, %v1617
    %v1619 = vand.u32 %v1618, 4294901760
    %v1620 = vsub.f32 %v1618, %v1619
    %v1621 = vand.u32 %v1620, 4294901760
    %1622 = vmatpush1.msra.mxu0 %v1621
    %1623 = vmatprep.subr.mxu0 0.0
    %1624 = vmatpush1.msra.mxu0 0.0
    %1625 = vmatprep.subr.mxu0 0.0
    %1626 = vmatpush1.msra.mxu0 0.0
    %1627 = vmatprep.subr.mxu0 0.0
    %1628 = vmatpush1.msra.mxu0 0.0
    %1629 = vmatprep.subr.mxu0 0.0
    %1630 = vmatpush1.msra.mxu0 0.0
    %1631 = vmatprep.subr.mxu0 0.0
    %1632 = vmatpush1.msra.mxu0 0.0
    %1633 = vmatprep.subr.mxu0 0.0
    %1634 = vmatpush1.msra.mxu0 0.0
    %1635 = vmatprep.subr.mxu0 0.0
    %1636 = vmatpush1.msra.mxu0 0.0
    %1637 = vmatprep.subr.mxu0 0.0
    %1638 = vmatpush1.msra.mxu0 0.0
    %1639 = vmatprep.subr.mxu0 0.0
    %1640 = vmatpush1.msra.mxu0 0.0
    %1641 = vmatprep.subr.mxu0 0.0
    %1642 = vmatpush1.msra.mxu0 0.0
    %1643 = vmatprep.subr.mxu0 0.0
    %1644 = vmatpush1.msra.mxu0 0.0
    %1645 = vmatprep.subr.mxu0 0.0
    %1646 = vmatpush1.msra.mxu0 0.0
    %1647 = vmatprep.subr.mxu0 0.0
    %1648 = vmatpush1.msra.mxu0 0.0
    %1649 = vmatprep.subr.mxu0 0.0
    %1650 = vmatpush1.msra.mxu0 0.0
    %1651 = vmatprep.subr.mxu0 0.0
    %1652 = vmatpush1.msra.mxu0 0.0
    %1653 = vmatprep.subr.mxu0 0.0
    %1654 = vmatpush1.msra.mxu0 0.0
    %1655 = vmatprep.subr.mxu0 0.0
    %1656 = vmatpush1.msra.mxu0 0.0
    %1657 = vmatprep.subr.mxu0 0.0
    %1658 = vmatpush1.msra.mxu0 0.0
    %1659 = vmatprep.subr.mxu0 0.0
    %1660 = vmatpush1.msra.mxu0 0.0
    %1661 = vmatprep.subr.mxu0 0.0
    %1662 = vmatpush1.msra.mxu0 0.0
    %1663 = vmatprep.subr.mxu0 0.0
    %1664 = vmatpush1.msra.mxu0 0.0
    %1665 = vmatprep.subr.mxu0 0.0
    %1666 = vmatpush1.msra.mxu0 0.0
    %1667 = vmatprep.subr.mxu0 0.0
    %1668 = vmatpush1.msra.mxu0 0.0
    %1669 = vmatprep.subr.mxu0 0.0
    %1670 = vmatpush1.msra.mxu0 0.0
    %1671 = vmatprep.subr.mxu0 0.0
    %1672 = vmatpush1.msra.mxu0 0.0
    %1673 = vmatprep.subr.mxu0 0.0
    %1674 = vmatpush1.msra.mxu0 0.0
    %1675 = vmatprep.subr.mxu0 0.0
    %1676 = vmatpush1.msra.mxu0 0.0
    %1677 = vmatprep.subr.mxu0 0.0
    %1678 = vmatpush1.msra.mxu0 0.0
    %1679 = vmatprep.mubr.f32.mxu0 0.0
    %v1680 = vand.u32 %v1514, 4294901760
    %1681 = vmatmul.mubr.f32.gmra.mrb[0].mxu0 %v1680
    %v1682 = vpop.f32.mrb[0].mxu0
    %v1683 = vadd.f32 %v1592, %v1682
    %v1684 = vpop.f32.mrb[0].mxu0
    %1685 = vdwg.mxu0
    %1686 = vmatprep.subr.mxu0 0.0
    %v1687 = vand.u32 %v1501, 4294901760
    %v1688 = vsub.f32 %v1501, %v1687
    %1689 = vmatpush1.msra.mxu0 %v1688
    %1690 = vmatprep.subr.mxu0 0.0
    %v1691 = vand.u32 %v1502, 4294901760
    %v1692 = vsub.f32 %v1502, %v1691
    %1693 = vmatpush1.msra.mxu0 %v1692
    %1694 = vmatprep.subr.mxu0 0.0
    %v1695 = vand.u32 %v1503, 4294901760
    %v1696 = vsub.f32 %v1503, %v1695
    %1697 = vmatpush1.msra.mxu0 %v1696
    %1698 = vmatprep.subr.mxu0 0.0
    %v1699 = vand.u32 %v1504, 4294901760
    %v1700 = vsub.f32 %v1504, %v1699
    %1701 = vmatpush1.msra.mxu0 %v1700
    %1702 = vmatprep.subr.mxu0 0.0
    %1703 = vmatpush1.msra.mxu0 0.0
    %1704 = vmatprep.subr.mxu0 0.0
    %1705 = vmatpush1.msra.mxu0 0.0
    %1706 = vmatprep.subr.mxu0 0.0
    %1707 = vmatpush1.msra.mxu0 0.0
    %1708 = vmatprep.subr.mxu0 0.0
    %1709 = vmatpush1.msra.mxu0 0.0
    %1710 = vmatprep.subr.mxu0 0.0
    %1711 = vmatpush1.msra.mxu0 0.0
    %1712 = vmatprep.subr.mxu0 0.0
    %1713 = vmatpush1.msra.mxu0 0.0
    %1714 = vmatprep.subr.mxu0 0.0
    %1715 = vmatpush1.msra.mxu0 0.0
    %1716 = vmatprep.subr.mxu0 0.0
    %1717 = vmatpush1.msra.mxu0 0.0
    %1718 = vmatprep.subr.mxu0 0.0
    %1719 = vmatpush1.msra.mxu0 0.0
    %1720 = vmatprep.subr.mxu0 0.0
    %1721 = vmatpush1.msra.mxu0 0.0
    %1722 = vmatprep.subr.mxu0 0.0
    %1723 = vmatpush1.msra.mxu0 0.0
    %1724 = vmatprep.subr.mxu0 0.0
    %1725 = vmatpush1.msra.mxu0 0.0
    %1726 = vmatprep.subr.mxu0 0.0
    %1727 = vmatpush1.msra.mxu0 0.0
    %1728 = vmatprep.subr.mxu0 0.0
    %1729 = vmatpush1.msra.mxu0 0.0
    %1730 = vmatprep.subr.mxu0 0.0
    %1731 = vmatpush1.msra.mxu0 0.0
    %1732 = vmatprep.subr.mxu0 0.0
    %1733 = vmatpush1.msra.mxu0 0.0
    %1734 = vmatprep.subr.mxu0 0.0
    %1735 = vmatpush1.msra.mxu0 0.0
    %1736 = vmatprep.subr.mxu0 0.0
    %1737 = vmatpush1.msra.mxu0 0.0
    %1738 = vmatprep.subr.mxu0 0.0
    %1739 = vmatpush1.msra.mxu0 0.0
    %1740 = vmatprep.subr.mxu0 0.0
    %1741 = vmatpush1.msra.mxu0 0.0
    %1742 = vmatprep.subr.mxu0 0.0
    %1743 = vmatpush1.msra.mxu0 0.0
    %1744 = vmatprep.subr.mxu0 0.0
    %1745 = vmatpush1.msra.mxu0 0.0
    %1746 = vmatprep.subr.mxu0 0.0
    %1747 = vmatpush1.msra.mxu0 0.0
    %1748 = vmatprep.subr.mxu0 0.0
    %1749 = vmatpush1.msra.mxu0 0.0
    %1750 = vmatprep.subr.mxu0 0.0
    %1751 = vmatpush1.msra.mxu0 0.0
    %1752 = vmatprep.subr.mxu0 0.0
    %1753 = vmatpush1.msra.mxu0 0.0
    %1754 = vmatprep.subr.mxu0 0.0
    %1755 = vmatpush1.msra.mxu0 0.0
    %1756 = vmatprep.subr.mxu0 0.0
    %1757 = vmatpush1.msra.mxu0 0.0
    %1758 = vmatprep.mubr.f32.mxu0 0.0
    %v1759 = vand.u32 %v1514, 4294901760
    %v1760 = vsub.f32 %v1514, %v1759
    %1761 = vmatmul.mubr.f32.gmra.mrb[0].mxu0 %v1760
    %v1762 = vpop.f32.mrb[0].mxu0
    %v1763 = vadd.f32 %v1683, %v1762
    %v1764 = vpop.f32.mrb[0].mxu0
    %1765 = vdwg.mxu0
    %1766 = vmatprep.subr.mxu0 0.0
    %v1767 = vand.u32 %v1501, 4294901760
    %1768 = vmatpush1.msra.mxu0 %v1767
    %1769 = vmatprep.subr.mxu0 0.0
    %v1770 = vand.u32 %v1502, 4294901760
    %1771 = vmatpush1.msra.mxu0 %v1770
    %1772 = vmatprep.subr.mxu0 0.0
    %v1773 = vand.u32 %v1503, 4294901760
    %1774 = vmatpush1.msra.mxu0 %v1773
    %1775 = vmatprep.subr.mxu0 0.0
    %v1776 = vand.u32 %v1504, 4294901760
    %1777 = vmatpush1.msra.mxu0 %v1776
    %1778 = vmatprep.subr.mxu0 0.0
    %1779 = vmatpush1.msra.mxu0 0.0
    %1780 = vmatprep.subr.mxu0 0.0
    %1781 = vmatpush1.msra.mxu0 0.0
    %1782 = vmatprep.subr.mxu0 0.0
    %1783 = vmatpush1.msra.mxu0 0.0
    %1784 = vmatprep.subr.mxu0 0.0
    %1785 = vmatpush1.msra.mxu0 0.0
    %1786 = vmatprep.subr.mxu0 0.0
    %1787 = vmatpush1.msra.mxu0 0.0
    %1788 = vmatprep.subr.mxu0 0.0
    %1789 = vmatpush1.msra.mxu0 0.0
    %1790 = vmatprep.subr.mxu0 0.0
    %1791 = vmatpush1.msra.mxu0 0.0
    %1792 = vmatprep.subr.mxu0 0.0
    %1793 = vmatpush1.msra.mxu0 0.0
    %1794 = vmatprep.subr.mxu0 0.0
    %1795 = vmatpush1.msra.mxu0 0.0
    %1796 = vmatprep.subr.mxu0 0.0
    %1797 = vmatpush1.msra.mxu0 0.0
    %1798 = vmatprep.subr.mxu0 0.0
    %1799 = vmatpush1.msra.mxu0 0.0
    %1800 = vmatprep.subr.mxu0 0.0
    %1801 = vmatpush1.msra.mxu0 0.0
    %1802 = vmatprep.subr.mxu0 0.0
    %1803 = vmatpush1.msra.mxu0 0.0
    %1804 = vmatprep.subr.mxu0 0.0
    %1805 = vmatpush1.msra.mxu0 0.0
    %1806 = vmatprep.subr.mxu0 0.0
    %1807 = vmatpush1.msra.mxu0 0.0
    %1808 = vmatprep.subr.mxu0 0.0
    %1809 = vmatpush1.msra.mxu0 0.0
    %1810 = vmatprep.subr.mxu0 0.0
    %1811 = vmatpush1.msra.mxu0 0.0
    %1812 = vmatprep.subr.mxu0 0.0
    %1813 = vmatpush1.msra.mxu0 0.0
    %1814 = vmatprep.subr.mxu0 0.0
    %1815 = vmatpush1.msra.mxu0 0.0
    %1816 = vmatprep.subr.mxu0 0.0
    %1817 = vmatpush1.msra.mxu0 0.0
    %1818 = vmatprep.subr.mxu0 0.0
    %1819 = vmatpush1.msra.mxu0 0.0
    %1820 = vmatprep.subr.mxu0 0.0
    %1821 = vmatpush1.msra.mxu0 0.0
    %1822 = vmatprep.subr.mxu0 0.0
    %1823 = vmatpush1.msra.mxu0 0.0
    %1824 = vmatprep.subr.mxu0 0.0
    %1825 = vmatpush1.msra.mxu0 0.0
    %1826 = vmatprep.subr.mxu0 0.0
    %1827 = vmatpush1.msra.mxu0 0.0
    %1828 = vmatprep.subr.mxu0 0.0
    %1829 = vmatpush1.msra.mxu0 0.0
    %1830 = vmatprep.subr.mxu0 0.0
    %1831 = vmatpush1.msra.mxu0 0.0
    %1832 = vmatprep.subr.mxu0 0.0
    %1833 = vmatpush1.msra.mxu0 0.0
    %1834 = vmatprep.mubr.f32.mxu0 0.0
    %v1835 = vand.u32 %v1514, 4294901760
    %v1836 = vsub.f32 %v1514, %v1835
    %v1837 = vand.u32 %v1836, 4294901760
    %1838 = vmatmul.mubr.f32.gmra.mrb[0].mxu0 %v1837
    %v1839 = vpop.f32.mrb[0].mxu0
    %v1840 = vadd.f32 %v1763, %v1839
    %v1841 = vpop.f32.mrb[0].mxu0
    %1842 = vdwg.mxu0
    %1843 = vmatprep.subr.mxu0 0.0
    %v1844 = vand.u32 %v1501, 4294901760
    %v1845 = vsub.f32 %v1501, %v1844
    %v1846 = vand.u32 %v1845, 4294901760
    %1847 = vmatpush1.msra.mxu0 %v1846
    %1848 = vmatprep.subr.mxu0 0.0
    %v1849 = vand.u32 %v1502, 4294901760
    %v1850 = vsub.f32 %v1502, %v1849
    %v1851 = vand.u32 %v1850, 4294901760
    %1852 = vmatpush1.msra.mxu0 %v1851
    %1853 = vmatprep.subr.mxu0 0.0
    %v1854 = vand.u32 %v1503, 4294901760
    %v1855 = vsub.f32 %v1503, %v1854
    %v1856 = vand.u32 %v1855, 4294901760
    %1857 = vmatpush1.msra.mxu0 %v1856
    %1858 = vmatprep.subr.mxu0 0.0
    %v1859 = vand.u32 %v1504, 4294901760
    %v1860 = vsub.f32 %v1504, %v1859
    %v1861 = vand.u32 %v1860, 4294901760
    %1862 = vmatpush1.msra.mxu0 %v1861
    %1863 = vmatprep.subr.mxu0 0.0
    %1864 = vmatpush1.msra.mxu0 0.0
    %1865 = vmatprep.subr.mxu0 0.0
    %1866 = vmatpush1.msra.mxu0 0.0
    %1867 = vmatprep.subr.mxu0 0.0
    %1868 = vmatpush1.msra.mxu0 0.0
    %1869 = vmatprep.subr.mxu0 0.0
    %1870 = vmatpush1.msra.mxu0 0.0
    %1871 = vmatprep.subr.mxu0 0.0
    %1872 = vmatpush1.msra.mxu0 0.0
    %1873 = vmatprep.subr.mxu0 0.0
    %1874 = vmatpush1.msra.mxu0 0.0
    %1875 = vmatprep.subr.mxu0 0.0
    %1876 = vmatpush1.msra.mxu0 0.0
    %1877 = vmatprep.subr.mxu0 0.0
    %1878 = vmatpush1.msra.mxu0 0.0
    %1879 = vmatprep.subr.mxu0 0.0
    %1880 = vmatpush1.msra.mxu0 0.0
    %1881 = vmatprep.subr.mxu0 0.0
    %1882 = vmatpush1.msra.mxu0 0.0
    %1883 = vmatprep.subr.mxu0 0.0
    %1884 = vmatpush1.msra.mxu0 0.0
    %1885 = vmatprep.subr.mxu0 0.0
    %1886 = vmatpush1.msra.mxu0 0.0
    %1887 = vmatprep.subr.mxu0 0.0
    %1888 = vmatpush1.msra.mxu0 0.0
    %1889 = vmatprep.subr.mxu0 0.0
    %1890 = vmatpush1.msra.mxu0 0.0
    %1891 = vmatprep.subr.mxu0 0.0
    %1892 = vmatpush1.msra.mxu0 0.0
    %1893 = vmatprep.subr.mxu0 0.0
    %1894 = vmatpush1.msra.mxu0 0.0
    %1895 = vmatprep.subr.mxu0 0.0
    %1896 = vmatpush1.msra.mxu0 0.0
    %1897 = vmatprep.subr.mxu0 0.0
    %1898 = vmatpush1.msra.mxu0 0.0
    %1899 = vmatprep.subr.mxu0 0.0
    %1900 = vmatpush1.msra.mxu0 0.0
    %1901 = vmatprep.subr.mxu0 0.0
    %1902 = vmatpush1.msra.mxu0 0.0
    %1903 = vmatprep.subr.mxu0 0.0
    %1904 = vmatpush1.msra.mxu0 0.0
    %1905 = vmatprep.subr.mxu0 0.0
    %1906 = vmatpush1.msra.mxu0 0.0
    %1907 = vmatprep.subr.mxu0 0.0
    %1908 = vmatpush1.msra.mxu0 0.0
    %1909 = vmatprep.subr.mxu0 0.0
    %1910 = vmatpush1.msra.mxu0 0.0
    %1911 = vmatprep.subr.mxu0 0.0
    %1912 = vmatpush1.msra.mxu0 0.0
    %1913 = vmatprep.subr.mxu0 0.0
    %1914 = vmatpush1.msra.mxu0 0.0
    %1915 = vmatprep.subr.mxu0 0.0
    %1916 = vmatpush1.msra.mxu0 0.0
    %1917 = vmatprep.subr.mxu0 0.0
    %1918 = vmatpush1.msra.mxu0 0.0
    %1919 = vmatprep.mubr.f32.mxu0 0.0
    %v1920 = vand.u32 %v1514, 4294901760
    %1921 = vmatmul.mubr.f32.gmra.mrb[0].mxu0 %v1920
    %v1922 = vpop.f32.mrb[0].mxu0
    %v1923 = vadd.f32 %v1840, %v1922
    %v1924 = vpop.f32.mrb[0].mxu0
    %1925 = vdwg.mxu0
    %1926 = vmatprep.subr.mxu0 0.0
    %v1927 = vand.u32 %v1501, 4294901760
    %1928 = vmatpush1.msra.mxu0 %v1927
    %1929 = vmatprep.subr.mxu0 0.0
    %v1930 = vand.u32 %v1502, 4294901760
    %1931 = vmatpush1.msra.mxu0 %v1930
    %1932 = vmatprep.subr.mxu0 0.0
    %v1933 = vand.u32 %v1503, 4294901760
    %1934 = vmatpush1.msra.mxu0 %v1933
    %1935 = vmatprep.subr.mxu0 0.0
    %v1936 = vand.u32 %v1504, 4294901760
    %1937 = vmatpush1.msra.mxu0 %v1936
    %1938 = vmatprep.subr.mxu0 0.0
    %1939 = vmatpush1.msra.mxu0 0.0
    %1940 = vmatprep.subr.mxu0 0.0
    %1941 = vmatpush1.msra.mxu0 0.0
    %1942 = vmatprep.subr.mxu0 0.0
    %1943 = vmatpush1.msra.mxu0 0.0
    %1944 = vmatprep.subr.mxu0 0.0
    %1945 = vmatpush1.msra.mxu0 0.0
    %1946 = vmatprep.subr.mxu0 0.0
    %1947 = vmatpush1.msra.mxu0 0.0
    %1948 = vmatprep.subr.mxu0 0.0
    %1949 = vmatpush1.msra.mxu0 0.0
    %1950 = vmatprep.subr.mxu0 0.0
    %1951 = vmatpush1.msra.mxu0 0.0
    %1952 = vmatprep.subr.mxu0 0.0
    %1953 = vmatpush1.msra.mxu0 0.0
    %1954 = vmatprep.subr.mxu0 0.0
    %1955 = vmatpush1.msra.mxu0 0.0
    %1956 = vmatprep.subr.mxu0 0.0
    %1957 = vmatpush1.msra.mxu0 0.0
    %1958 = vmatprep.subr.mxu0 0.0
    %1959 = vmatpush1.msra.mxu0 0.0
    %1960 = vmatprep.subr.mxu0 0.0
    %1961 = vmatpush1.msra.mxu0 0.0
    %1962 = vmatprep.subr.mxu0 0.0
    %1963 = vmatpush1.msra.mxu0 0.0
    %1964 = vmatprep.subr.mxu0 0.0
    %1965 = vmatpush1.msra.mxu0 0.0
    %1966 = vmatprep.subr.mxu0 0.0
    %1967 = vmatpush1.msra.mxu0 0.0
    %1968 = vmatprep.subr.mxu0 0.0
    %1969 = vmatpush1.msra.mxu0 0.0
    %1970 = vmatprep.subr.mxu0 0.0
    %1971 = vmatpush1.msra.mxu0 0.0
    %1972 = vmatprep.subr.mxu0 0.0
    %1973 = vmatpush1.msra.mxu0 0.0
    %1974 = vmatprep.subr.mxu0 0.0
    %1975 = vmatpush1.msra.mxu0 0.0
    %1976 = vmatprep.subr.mxu0 0.0
    %1977 = vmatpush1.msra.mxu0 0.0
    %1978 = vmatprep.subr.mxu0 0.0
    %1979 = vmatpush1.msra.mxu0 0.0
    %1980 = vmatprep.subr.mxu0 0.0
    %1981 = vmatpush1.msra.mxu0 0.0
    %1982 = vmatprep.subr.mxu0 0.0
    %1983 = vmatpush1.msra.mxu0 0.0
    %1984 = vmatprep.subr.mxu0 0.0
    %1985 = vmatpush1.msra.mxu0 0.0
    %1986 = vmatprep.subr.mxu0 0.0
    %1987 = vmatpush1.msra.mxu0 0.0
    %1988 = vmatprep.subr.mxu0 0.0
    %1989 = vmatpush1.msra.mxu0 0.0
    %1990 = vmatprep.subr.mxu0 0.0
    %1991 = vmatpush1.msra.mxu0 0.0
    %1992 = vmatprep.subr.mxu0 0.0
    %1993 = vmatpush1.msra.mxu0 0.0
    %1994 = vmatprep.mubr.f32.mxu0 0.0
    %v1995 = vand.u32 %v1514, 4294901760
    %1996 = vmatmul.mubr.f32.gmra.mrb[0].mxu0 %v1995
    %v1997 = vpop.f32.mrb[0].mxu0
    %v1998 = vadd.f32 %v1923, %v1997
    %v1999 = vpop.f32.mrb[0].mxu0
    %2000 = vdwg.mxu0
    %vm2001 = vcmask 74752
    %2002 = vst.msk [vmem:[#allocation2] sm:$0x3] %vm2001, %v1998
    // Predicated region
    $region30: #{tpu_custom_call.1} parent=1 // pred_check
      _
    $region31: #{tpu_custom_call.1} parent=1 // pred_check_branch
      %2004 = sbr.rel (0) target = $region33
    $region32: #{tpu_custom_call.1} parent=1 // pred_region
      %s2006 = ssub.s32 32, 32
      %2007 = vsyncadd [#allocation3], %s2006
      %s2009 = sshll.u32 [#allocation2], 4
      %s2010 = int_to_ptr.vmem [resolvable:$true] %s2009
      %2012 = dma.vmem_to_hbm [thread:$0]  %s2010, 32, %s7, [#allocation3]
    $region33: #{tpu_custom_call.1} parent=1 // pred_fallthru
      _
    // Predicated region
    $region34: #{tpu_custom_call.1} parent=1 // pred_check
      _
    $region35: #{tpu_custom_call.1} parent=1 // pred_check_branch
      %2014 = sbr.rel (0) target = $region37
    $region36: #{tpu_custom_call.1} parent=1 // pred_region
      %2015 = dma.done [#allocation3], 32
    $region37: #{tpu_custom_call.1} parent=1 // pred_fallthru
      _
    %2016 = vsyncpa [#allocation3], 1

</llo_original>
